<compile_context>
chip_gen: v6e
topology: v6e:2x2x1
jax: 0.10.0
libtpu: 0.0.40
codegen_flags: <defaults>
</compile_context>

<pallas_src>
import numpy as np
import jax
import jax.numpy as jnp
from jax import lax
from jax.experimental import pallas as pl
from jax.experimental.pallas import tpu as pltpu


# ---------------------------------------------------------------------------
# Fused Pallas kernel (all LSTM layers + FC)
# ---------------------------------------------------------------------------

def _make_lstm_kernel(num_layers, S, bb, H):
    G = 4 * H

    def kernel(*refs):
        # refs: x, (w_ih, w_hh, b) * L, fc_w, fc_b, out, xbuf, hseq
        x_ref = refs[0]
        fc_w_ref = refs[1 + 3 * num_layers]
        fc_b_ref = refs[2 + 3 * num_layers]
        out_ref = refs[3 + 3 * num_layers]
        xbuf_ref = refs[4 + 3 * num_layers]   # (S*bb, I)  bf16 staging buffer
        hseq_ref = refs[5 + 3 * num_layers]   # (S*bb, H)  bf16 per-layer h-seq

        # Lane mask selecting the tanh ("g") gate block, built once (gate
        # order along the 4H lanes is [i | f | g | o], as in torch.nn.LSTM).
        lane = lax.broadcasted_iota(jnp.int32, (bb, G), 1)
        g_mask = (lane >= 2 * H) & (lane < 3 * H)

        # Stage the (S, bb, I) time-major input block into a flat (S*bb, I)
        # VMEM buffer so the whole-sequence input projection is one matmul.
        for t in range(S):
            xbuf_ref[t * bb:(t + 1) * bb, :] = x_ref[t]

        h = None
        for l in range(num_layers):
            w_ih_ref = refs[1 + 3 * l]    # (Fin, 4H) bf16
            w_hh_ref = refs[2 + 3 * l]    # (H,   4H) bf16
            b_ref = refs[3 + 3 * l]       # (1,   4H) f32  (b_ih + b_hh)
            last = (l == num_layers - 1)

            seq_in = xbuf_ref[...] if l == 0 else hseq_ref[...]

            # Whole-sequence input projection: one big MXU matmul, bias folded
            # in here (no per-step bias broadcast inside the recurrence).
            proj = jnp.dot(seq_in, w_ih_ref[...],
                           preferred_element_type=jnp.float32) + b_ref[...]

            w_hh = w_hh_ref[...]          # hoisted out of the time loop

            h = jnp.zeros((bb, H), jnp.float32)
            c = jnp.zeros((bb, H), jnp.float32)   # == torch h0/c0 zeros
            for t in range(S):            # fully unrolled: short, static S
                r = t * bb
                gates = proj[r:r + bb, :] + jnp.dot(
                    h.astype(jnp.bfloat16), w_hh,
                    preferred_element_type=jnp.float32)          # (bb, 4H) f32

                # Full-width activation + lane-mask select (2 EUP ops instead
                # of 4 sub-lane-width ones), then static gate slices.
                act = jnp.where(g_mask, jnp.tanh(gates), jax.nn.sigmoid(gates))
                i_g = act[:, 0:H]
                f_g = act[:, H:2 * H]
                g_g = act[:, 2 * H:3 * H]
                o_g = act[:, 3 * H:4 * H]

                c = f_g * c + i_g * g_g
                h = o_g * jnp.tanh(c)

                if not last:
                    hseq_ref[r:r + bb, :] = h.astype(jnp.bfloat16)

        # Final Linear on the last timestep of the top layer (fused).
        out_ref[...] = (jnp.dot(h.astype(jnp.bfloat16), fc_w_ref[...],
                                preferred_element_type=jnp.float32)
                        + fc_b_ref[...])

    return kernel


# ---------------------------------------------------------------------------
# Wrapper
# ---------------------------------------------------------------------------

def lstm_model_forward(params, x, *, batch_block=None):
    """Equivalent of LstmModel.forward; x: (B, S, input_size) float32."""
    B, S, I = x.shape
    H = int(params["lstm"][0]["w_hh_t"].shape[0])
    O = int(params["fc_w_t"].shape[1])
    L = len(params["lstm"])

    bb = B if batch_block is None else batch_block
    assert B % bb == 0 and (bb == B or bb % 8 == 0), "batch block must tile B"
    grid = (B // bb,)

    # time-major (S, B, I), bf16 for the MXU (tiny one-time transpose/cast).
    x_tm = jnp.transpose(x, (1, 0, 2)).astype(jnp.bfloat16)

    inputs = [x_tm]
    in_specs = [pl.BlockSpec((S, bb, I), lambda b: (0, b, 0))]
    for layer in params["lstm"]:
        for name in ("w_ih_t", "w_hh_t", "b"):
            arr = layer[name]
            inputs.append(arr)
            in_specs.append(pl.BlockSpec(arr.shape, lambda b: (0, 0)))
    for name in ("fc_w_t", "fc_b"):
        arr = params[name]
        inputs.append(arr)
        in_specs.append(pl.BlockSpec(arr.shape, lambda b: (0, 0)))

    kernel = _make_lstm_kernel(L, S, bb, H)

    # Rough VMEM budget; clamp to [32 MiB, 64 MiB] so it is safe on v7x's
    # 64 MiB VMEM while still raising the 16/32 MiB default scoped limit.
    param_bytes = sum(int(np.prod(a.shape)) * a.dtype.itemsize for a in inputs)
    scratch_bytes = S * bb * (I + H) * 2 + 4 * S * bb * 4 * H
    vmem_limit = int(min(64 << 20, max(32 << 20, 8 * (param_bytes + scratch_bytes))))

    return pl.pallas_call(
        kernel,
        out_shape=jax.ShapeDtypeStruct((B, O), jnp.float32),
        grid=grid,
        in_specs=in_specs,
        out_specs=pl.BlockSpec((bb, O), lambda b: (b, 0)),
        scratch_shapes=[
            pltpu.VMEM((S * bb, I), jnp.bfloat16),   # staged input sequence
            pltpu.VMEM((S * bb, H), jnp.bfloat16),   # inter-layer hidden seq
        ],
        compiler_params=pltpu.CompilerParams(
            dimension_semantics=("parallel",),       # batch blocks -> 2 TCs on v7x
            vmem_limit_bytes=vmem_limit,
        ),
    )(*inputs)


# ---------------------------------------------------------------------------
# Deterministic parameter construction (matches nn.LSTM / nn.Linear shapes)
# ---------------------------------------------------------------------------

def init_params(key, input_size, hidden_size, num_layers, output_size):
    k = 1.0 / np.sqrt(hidden_size)
    params = {"lstm": []}
    for layer in range(num_layers):
        in_sz = input_size if layer == 0 else hidden_size
        key, k1, k2, k3, k4 = jax.random.split(key, 5)
        # PyTorch stores W_ih: (4H, in_sz), W_hh: (4H, H), gate order [i,f,g,o].
        w_ih = jax.random.uniform(k1, (4 * hidden_size, in_sz), jnp.float32, -k, k)
        w_hh = jax.random.uniform(k2, (4 * hidden_size, hidden_size), jnp.float32, -k, k)
        b_ih = jax.random.uniform(k3, (4 * hidden_size,), jnp.float32, -k, k)
        b_hh = jax.random.uniform(k4, (4 * hidden_size,), jnp.float32, -k, k)
        params["lstm"].append({
            "w_ih_t": jnp.transpose(w_ih).astype(jnp.bfloat16),   # (in_sz, 4H)
            "w_hh_t": jnp.transpose(w_hh).astype(jnp.bfloat16),   # (H, 4H)
            "b": (b_ih + b_hh).reshape(1, 4 * hidden_size),       # (1, 4H) f32
        })
    key, k5, k6 = jax.random.split(key, 3)
    kf = 1.0 / np.sqrt(hidden_size)
    fc_w = jax.random.uniform(k5, (output_size, hidden_size), jnp.float32, -kf, kf)
    fc_b = jax.random.uniform(k6, (output_size,), jnp.float32, -kf, kf)
    params["fc_w_t"] = jnp.transpose(fc_w).astype(jnp.bfloat16)   # (H, O)
    params["fc_b"] = fc_b.reshape(1, output_size)                 # (1, O) f32
    return params


# ---------------------------------------------------------------------------
# Pure numpy reference (mirrors torch.nn.LSTM semantics) for verification
# ---------------------------------------------------------------------------

def reference_forward(params, x):
    def f32(a):
        return np.asarray(jax.device_get(a)).astype(np.float32)

    def sigmoid(z):
        return 1.0 / (1.0 + np.exp(-z))

    xs = np.transpose(np.asarray(x, np.float32), (1, 0, 2))   # (S, B, I)
    for layer in params["lstm"]:
        w_ih = f32(layer["w_ih_t"])
        w_hh = f32(layer["w_hh_t"])
        b = f32(layer["b"])
        S, B, _ = xs.shape
        H = w_hh.shape[0]
        h = np.zeros((B, H), np.float32)
        c = np.zeros((B, H), np.float32)
        outs = []
        for t in range(S):
            g = xs[t] @ w_ih + h @ w_hh + b
            i = sigmoid(g[:, 0:H])
            f = sigmoid(g[:, H:2 * H])
            gg = np.tanh(g[:, 2 * H:3 * H])
            o = sigmoid(g[:, 3 * H:4 * H])
            c = f * c + i * gg
            h = o * np.tanh(c)
            outs.append(h)
        xs = np.stack(outs, axis=0)
    return xs[-1] @ f32(params["fc_w_t"]) + f32(params["fc_b"])


# ---------------------------------------------------------------------------
# Main
# ---------------------------------------------------------------------------

if __name__ == "__main__":
    input_size = 4
    hidden_size = 32
    num_layers = 2
    output_size = 3
    batch = 2
    seq = 8

    key = jax.random.PRNGKey(0)
    key, xk, pk = jax.random.split(key, 3)
    x = jax.random.normal(xk, (batch, seq, input_size), jnp.float32)
    params = init_params(pk, input_size, hidden_size, num_layers, output_size)

    fwd = jax.jit(lstm_model_forward)
    out = jax.block_until_ready(fwd(params, x))

    ref = reference_forward(params, x)
    assert out.shape == (batch, output_size)
    # bf16 matmuls (f32 accumulation) vs f32 numpy reference -> bf16 tolerance.
    np.testing.assert_allclose(np.asarray(out, np.float32), ref, rtol=2e-2, atol=2e-2)

    print("KERNEL_OK")
</pallas_src>

<mosaic_0001>
module attributes {stable_mosaic.version = 11 : i64} {
  func.func @kernel(%arg0: i32, %arg1: memref<8x2x4xbf16, #tpu.memory_space<vmem>>, %arg2: memref<4x128xbf16, #tpu.memory_space<vmem>>, %arg3: memref<32x128xbf16, #tpu.memory_space<vmem>>, %arg4: memref<1x128xf32, #tpu.memory_space<vmem>>, %arg5: memref<32x128xbf16, #tpu.memory_space<vmem>>, %arg6: memref<32x128xbf16, #tpu.memory_space<vmem>>, %arg7: memref<1x128xf32, #tpu.memory_space<vmem>>, %arg8: memref<32x3xbf16, #tpu.memory_space<vmem>>, %arg9: memref<1x3xf32, #tpu.memory_space<vmem>>, %arg10: memref<2x3xf32, #tpu.memory_space<vmem>>, %arg11: memref<16x4xbf16, #tpu.memory_space<vmem>>, %arg12: memref<16x32xbf16, #tpu.memory_space<vmem>>) attributes {dimension_semantics = [#tpu.dimension_semantics<parallel>], iteration_bounds = array<i64: 1>, scalar_prefetch = 0 : i64, scratch_operands = 2 : i64, tpu.core_type = #tpu.core_type<tc>, window_params = [{transform_indices = @transform_0, window_bounds = array<i64: 8, 2, 4>}, {pipeline_mode = #tpu.pipeline_mode<synchronous>, transform_indices = @transform_1, window_bounds = array<i64: 4, 128>}, {pipeline_mode = #tpu.pipeline_mode<synchronous>, transform_indices = @transform_2, window_bounds = array<i64: 32, 128>}, {pipeline_mode = #tpu.pipeline_mode<synchronous>, transform_indices = @transform_3, window_bounds = array<i64: 1, 128>}, {pipeline_mode = #tpu.pipeline_mode<synchronous>, transform_indices = @transform_4, window_bounds = array<i64: 32, 128>}, {pipeline_mode = #tpu.pipeline_mode<synchronous>, transform_indices = @transform_5, window_bounds = array<i64: 32, 128>}, {pipeline_mode = #tpu.pipeline_mode<synchronous>, transform_indices = @transform_6, window_bounds = array<i64: 1, 128>}, {pipeline_mode = #tpu.pipeline_mode<synchronous>, transform_indices = @transform_7, window_bounds = array<i64: 32, 3>}, {pipeline_mode = #tpu.pipeline_mode<synchronous>, transform_indices = @transform_8, window_bounds = array<i64: 1, 3>}, {transform_indices = @transform_9, window_bounds = array<i64: 2, 3>}]} {
    %0 = tpu.iota {dimensions = array<i32: 1>} : vector<2x128xi32>
    %c64_i32 = arith.constant 64 : i32
    %1 = vector.broadcast %c64_i32 : i32 to vector<2x128xi32>
    %2 = arith.cmpi sge, %0, %1 : vector<2x128xi32>
    %c96_i32 = arith.constant 96 : i32
    %3 = vector.broadcast %c96_i32 : i32 to vector<2x128xi32>
    %4 = arith.cmpi slt, %0, %3 : vector<2x128xi32>
    %5 = arith.andi %2, %4 : vector<2x128xi1>
    %c0 = arith.constant 0 : index
    %c0_0 = arith.constant 0 : index
    %c0_1 = arith.constant 0 : index
    %6 = vector.load %arg1[%c0, %c0_0, %c0_1] : memref<8x2x4xbf16, #tpu.memory_space<vmem>>, vector<1x2x4xbf16>
    %7 = vector.shape_cast %6 : vector<1x2x4xbf16> to vector<2x4xbf16>
    %c0_2 = arith.constant 0 : index
    %c0_3 = arith.constant 0 : index
    %8 = vector.load %arg11[%c0_2, %c0_3] : memref<16x4xbf16, #tpu.memory_space<vmem>>, vector<2x4xbf16>
    tpu.vector_store %arg11[%c0_2, %c0_3], %7 {strides = array<i32>} : memref<16x4xbf16, #tpu.memory_space<vmem>>, vector<2x4xbf16>,
    %c1 = arith.constant 1 : index
    %c0_4 = arith.constant 0 : index
    %c0_5 = arith.constant 0 : index
    %9 = vector.load %arg1[%c1, %c0_4, %c0_5] : memref<8x2x4xbf16, #tpu.memory_space<vmem>>, vector<1x2x4xbf16>
    %10 = vector.shape_cast %9 : vector<1x2x4xbf16> to vector<2x4xbf16>
    %c2 = arith.constant 2 : index
    %c0_6 = arith.constant 0 : index
    %11 = vector.load %arg11[%c2, %c0_6] : memref<16x4xbf16, #tpu.memory_space<vmem>>, vector<2x4xbf16>
    tpu.vector_store %arg11[%c2, %c0_6], %10 {strides = array<i32>} : memref<16x4xbf16, #tpu.memory_space<vmem>>, vector<2x4xbf16>,
    %c2_7 = arith.constant 2 : index
    %c0_8 = arith.constant 0 : index
    %c0_9 = arith.constant 0 : index
    %12 = vector.load %arg1[%c2_7, %c0_8, %c0_9] : memref<8x2x4xbf16, #tpu.memory_space<vmem>>, vector<1x2x4xbf16>
    %13 = vector.shape_cast %12 : vector<1x2x4xbf16> to vector<2x4xbf16>
    %c4 = arith.constant 4 : index
    %c0_10 = arith.constant 0 : index
    %14 = vector.load %arg11[%c4, %c0_10] : memref<16x4xbf16, #tpu.memory_space<vmem>>, vector<2x4xbf16>
    tpu.vector_store %arg11[%c4, %c0_10], %13 {strides = array<i32>} : memref<16x4xbf16, #tpu.memory_space<vmem>>, vector<2x4xbf16>,
    %c3 = arith.constant 3 : index
    %c0_11 = arith.constant 0 : index
    %c0_12 = arith.constant 0 : index
    %15 = vector.load %arg1[%c3, %c0_11, %c0_12] : memref<8x2x4xbf16, #tpu.memory_space<vmem>>, vector<1x2x4xbf16>
    %16 = vector.shape_cast %15 : vector<1x2x4xbf16> to vector<2x4xbf16>
    %c6 = arith.constant 6 : index
    %c0_13 = arith.constant 0 : index
    %17 = vector.load %arg11[%c6, %c0_13] : memref<16x4xbf16, #tpu.memory_space<vmem>>, vector<2x4xbf16>
    tpu.vector_store %arg11[%c6, %c0_13], %16 {strides = array<i32>} : memref<16x4xbf16, #tpu.memory_space<vmem>>, vector<2x4xbf16>,
    %c4_14 = arith.constant 4 : index
    %c0_15 = arith.constant 0 : index
    %c0_16 = arith.constant 0 : index
    %18 = vector.load %arg1[%c4_14, %c0_15, %c0_16] : memref<8x2x4xbf16, #tpu.memory_space<vmem>>, vector<1x2x4xbf16>
    %19 = vector.shape_cast %18 : vector<1x2x4xbf16> to vector<2x4xbf16>
    %c8 = arith.constant 8 : index
    %c0_17 = arith.constant 0 : index
    %20 = vector.load %arg11[%c8, %c0_17] : memref<16x4xbf16, #tpu.memory_space<vmem>>, vector<2x4xbf16>
    tpu.vector_store %arg11[%c8, %c0_17], %19 {strides = array<i32>} : memref<16x4xbf16, #tpu.memory_space<vmem>>, vector<2x4xbf16>,
    %c5 = arith.constant 5 : index
    %c0_18 = arith.constant 0 : index
    %c0_19 = arith.constant 0 : index
    %21 = vector.load %arg1[%c5, %c0_18, %c0_19] : memref<8x2x4xbf16, #tpu.memory_space<vmem>>, vector<1x2x4xbf16>
    %22 = vector.shape_cast %21 : vector<1x2x4xbf16> to vector<2x4xbf16>
    %c10 = arith.constant 10 : index
    %c0_20 = arith.constant 0 : index
    %23 = vector.load %arg11[%c10, %c0_20] : memref<16x4xbf16, #tpu.memory_space<vmem>>, vector<2x4xbf16>
    tpu.vector_store %arg11[%c10, %c0_20], %22 {strides = array<i32>} : memref<16x4xbf16, #tpu.memory_space<vmem>>, vector<2x4xbf16>,
    %c6_21 = arith.constant 6 : index
    %c0_22 = arith.constant 0 : index
    %c0_23 = arith.constant 0 : index
    %24 = vector.load %arg1[%c6_21, %c0_22, %c0_23] : memref<8x2x4xbf16, #tpu.memory_space<vmem>>, vector<1x2x4xbf16>
    %25 = vector.shape_cast %24 : vector<1x2x4xbf16> to vector<2x4xbf16>
    %c12 = arith.constant 12 : index
    %c0_24 = arith.constant 0 : index
    %26 = vector.load %arg11[%c12, %c0_24] : memref<16x4xbf16, #tpu.memory_space<vmem>>, vector<2x4xbf16>
    tpu.vector_store %arg11[%c12, %c0_24], %25 {strides = array<i32>} : memref<16x4xbf16, #tpu.memory_space<vmem>>, vector<2x4xbf16>,
    %c7 = arith.constant 7 : index
    %c0_25 = arith.constant 0 : index
    %c0_26 = arith.constant 0 : index
    %27 = vector.load %arg1[%c7, %c0_25, %c0_26] : memref<8x2x4xbf16, #tpu.memory_space<vmem>>, vector<1x2x4xbf16>
    %28 = vector.shape_cast %27 : vector<1x2x4xbf16> to vector<2x4xbf16>
    %c14 = arith.constant 14 : index
    %c0_27 = arith.constant 0 : index
    %29 = vector.load %arg11[%c14, %c0_27] : memref<16x4xbf16, #tpu.memory_space<vmem>>, vector<2x4xbf16>
    tpu.vector_store %arg11[%c14, %c0_27], %28 {strides = array<i32>} : memref<16x4xbf16, #tpu.memory_space<vmem>>, vector<2x4xbf16>,
    %c0_28 = arith.constant 0 : index
    %c0_29 = arith.constant 0 : index
    %30 = vector.load %arg11[%c0_28, %c0_29] : memref<16x4xbf16, #tpu.memory_space<vmem>>, vector<16x4xbf16>
    %c0_30 = arith.constant 0 : index
    %c0_31 = arith.constant 0 : index
    %31 = vector.load %arg2[%c0_30, %c0_31] : memref<4x128xbf16, #tpu.memory_space<vmem>>, vector<4x128xbf16>
    %cst = arith.constant dense<0.000000e+00> : vector<16x128xf32>
    %32 = tpu.matmul %30, %31, %cst {dimension_numbers = #tpu.dot_dimension_numbers<[1], [0], [0], [1], [0, 0, 1, 1], [], []>} : vector<16x4xbf16>, vector<4x128xbf16>, vector<16x128xf32> -> vector<16x128xf32>
    %c0_32 = arith.constant 0 : index
    %c0_33 = arith.constant 0 : index
    %33 = vector.load %arg4[%c0_32, %c0_33] : memref<1x128xf32, #tpu.memory_space<vmem>>, vector<1x128xf32>
    %34 = vector.broadcast %33 : vector<1x128xf32> to vector<16x128xf32>
    %35 = arith.addf %32, %34 : vector<16x128xf32>
    %c0_34 = arith.constant 0 : index
    %c0_35 = arith.constant 0 : index
    %36 = vector.load %arg3[%c0_34, %c0_35] : memref<32x128xbf16, #tpu.memory_space<vmem>>, vector<32x128xbf16>
    %cst_36 = arith.constant 0.000000e+00 : f32
    %37 = vector.broadcast %cst_36 : f32 to vector<2x32xf32>
    %cst_37 = arith.constant 0.000000e+00 : f32
    %38 = vector.broadcast %cst_37 : f32 to vector<2x32xf32>
    %39 = vector.extract_strided_slice %35 {offsets = [0, 0], sizes = [2, 128], strides = [1, 1]} : vector<16x128xf32> to vector<2x128xf32>
    %40 = arith.truncf %37 : vector<2x32xf32> to vector<2x32xbf16>
    %cst_38 = arith.constant dense<0.000000e+00> : vector<2x128xf32>
    %41 = tpu.matmul %40, %36, %cst_38 {dimension_numbers = #tpu.dot_dimension_numbers<[1], [0], [0], [1], [0, 0, 1, 1], [], []>} : vector<2x32xbf16>, vector<32x128xbf16>, vector<2x128xf32> -> vector<2x128xf32>
    %42 = arith.addf %39, %41 : vector<2x128xf32>
    %43 = math.tanh %42 : vector<2x128xf32>
    %44 = arith.negf %42 : vector<2x128xf32>
    %45 = math.exp %44 : vector<2x128xf32>
    %cst_39 = arith.constant 1.000000e+00 : f32
    %46 = vector.broadcast %cst_39 : f32 to vector<2x128xf32>
    %47 = arith.addf %46, %45 : vector<2x128xf32>
    %48 = arith.divf %46, %47 : vector<2x128xf32>
    %49 = arith.select %5, %43, %48 : vector<2x128xi1>, vector<2x128xf32>
    %50 = vector.extract_strided_slice %49 {offsets = [0, 0], sizes = [2, 32], strides = [1, 1]} : vector<2x128xf32> to vector<2x32xf32>
    %51 = vector.extract_strided_slice %49 {offsets = [0, 32], sizes = [2, 32], strides = [1, 1]} : vector<2x128xf32> to vector<2x32xf32>
    %52 = vector.extract_strided_slice %49 {offsets = [0, 64], sizes = [2, 32], strides = [1, 1]} : vector<2x128xf32> to vector<2x32xf32>
    %53 = vector.extract_strided_slice %49 {offsets = [0, 96], sizes = [2, 32], strides = [1, 1]} : vector<2x128xf32> to vector<2x32xf32>
    %54 = arith.mulf %51, %38 : vector<2x32xf32>
    %55 = arith.mulf %50, %52 : vector<2x32xf32>
    %56 = arith.addf %54, %55 : vector<2x32xf32>
    %57 = math.tanh %56 : vector<2x32xf32>
    %58 = arith.mulf %53, %57 : vector<2x32xf32>
    %59 = arith.truncf %58 : vector<2x32xf32> to vector<2x32xbf16>
    %c0_40 = arith.constant 0 : index
    %c0_41 = arith.constant 0 : index
    %60 = vector.load %arg12[%c0_40, %c0_41] : memref<16x32xbf16, #tpu.memory_space<vmem>>, vector<2x32xbf16>
    tpu.vector_store %arg12[%c0_40, %c0_41], %59 {strides = array<i32>} : memref<16x32xbf16, #tpu.memory_space<vmem>>, vector<2x32xbf16>,
    %61 = vector.extract_strided_slice %35 {offsets = [2, 0], sizes = [2, 128], strides = [1, 1]} : vector<16x128xf32> to vector<2x128xf32>
    %62 = arith.truncf %58 : vector<2x32xf32> to vector<2x32xbf16>
    %cst_42 = arith.constant dense<0.000000e+00> : vector<2x128xf32>
    %63 = tpu.matmul %62, %36, %cst_42 {dimension_numbers = #tpu.dot_dimension_numbers<[1], [0], [0], [1], [0, 0, 1, 1], [], []>} : vector<2x32xbf16>, vector<32x128xbf16>, vector<2x128xf32> -> vector<2x128xf32>
    %64 = arith.addf %61, %63 : vector<2x128xf32>
    %65 = math.tanh %64 : vector<2x128xf32>
    %66 = arith.negf %64 : vector<2x128xf32>
    %67 = math.exp %66 : vector<2x128xf32>
    %cst_43 = arith.constant 1.000000e+00 : f32
    %68 = vector.broadcast %cst_43 : f32 to vector<2x128xf32>
    %69 = arith.addf %68, %67 : vector<2x128xf32>
    %70 = arith.divf %68, %69 : vector<2x128xf32>
    %71 = arith.select %5, %65, %70 : vector<2x128xi1>, vector<2x128xf32>
    %72 = vector.extract_strided_slice %71 {offsets = [0, 0], sizes = [2, 32], strides = [1, 1]} : vector<2x128xf32> to vector<2x32xf32>
    %73 = vector.extract_strided_slice %71 {offsets = [0, 32], sizes = [2, 32], strides = [1, 1]} : vector<2x128xf32> to vector<2x32xf32>
    %74 = vector.extract_strided_slice %71 {offsets = [0, 64], sizes = [2, 32], strides = [1, 1]} : vector<2x128xf32> to vector<2x32xf32>
    %75 = vector.extract_strided_slice %71 {offsets = [0, 96], sizes = [2, 32], strides = [1, 1]} : vector<2x128xf32> to vector<2x32xf32>
    %76 = arith.mulf %73, %56 : vector<2x32xf32>
    %77 = arith.mulf %72, %74 : vector<2x32xf32>
    %78 = arith.addf %76, %77 : vector<2x32xf32>
    %79 = math.tanh %78 : vector<2x32xf32>
    %80 = arith.mulf %75, %79 : vector<2x32xf32>
    %81 = arith.truncf %80 : vector<2x32xf32> to vector<2x32xbf16>
    %c2_44 = arith.constant 2 : index
    %c0_45 = arith.constant 0 : index
    %82 = vector.load %arg12[%c2_44, %c0_45] : memref<16x32xbf16, #tpu.memory_space<vmem>>, vector<2x32xbf16>
    tpu.vector_store %arg12[%c2_44, %c0_45], %81 {strides = array<i32>} : memref<16x32xbf16, #tpu.memory_space<vmem>>, vector<2x32xbf16>,
    %83 = vector.extract_strided_slice %35 {offsets = [4, 0], sizes = [2, 128], strides = [1, 1]} : vector<16x128xf32> to vector<2x128xf32>
    %84 = arith.truncf %80 : vector<2x32xf32> to vector<2x32xbf16>
    %cst_46 = arith.constant dense<0.000000e+00> : vector<2x128xf32>
    %85 = tpu.matmul %84, %36, %cst_46 {dimension_numbers = #tpu.dot_dimension_numbers<[1], [0], [0], [1], [0, 0, 1, 1], [], []>} : vector<2x32xbf16>, vector<32x128xbf16>, vector<2x128xf32> -> vector<2x128xf32>
    %86 = arith.addf %83, %85 : vector<2x128xf32>
    %87 = math.tanh %86 : vector<2x128xf32>
    %88 = arith.negf %86 : vector<2x128xf32>
    %89 = math.exp %88 : vector<2x128xf32>
    %cst_47 = arith.constant 1.000000e+00 : f32
    %90 = vector.broadcast %cst_47 : f32 to vector<2x128xf32>
    %91 = arith.addf %90, %89 : vector<2x128xf32>
    %92 = arith.divf %90, %91 : vector<2x128xf32>
    %93 = arith.select %5, %87, %92 : vector<2x128xi1>, vector<2x128xf32>
    %94 = vector.extract_strided_slice %93 {offsets = [0, 0], sizes = [2, 32], strides = [1, 1]} : vector<2x128xf32> to vector<2x32xf32>
    %95 = vector.extract_strided_slice %93 {offsets = [0, 32], sizes = [2, 32], strides = [1, 1]} : vector<2x128xf32> to vector<2x32xf32>
    %96 = vector.extract_strided_slice %93 {offsets = [0, 64], sizes = [2, 32], strides = [1, 1]} : vector<2x128xf32> to vector<2x32xf32>
    %97 = vector.extract_strided_slice %93 {offsets = [0, 96], sizes = [2, 32], strides = [1, 1]} : vector<2x128xf32> to vector<2x32xf32>
    %98 = arith.mulf %95, %78 : vector<2x32xf32>
    %99 = arith.mulf %94, %96 : vector<2x32xf32>
    %100 = arith.addf %98, %99 : vector<2x32xf32>
    %101 = math.tanh %100 : vector<2x32xf32>
    %102 = arith.mulf %97, %101 : vector<2x32xf32>
    %103 = arith.truncf %102 : vector<2x32xf32> to vector<2x32xbf16>
    %c4_48 = arith.constant 4 : index
    %c0_49 = arith.constant 0 : index
    %104 = vector.load %arg12[%c4_48, %c0_49] : memref<16x32xbf16, #tpu.memory_space<vmem>>, vector<2x32xbf16>
    tpu.vector_store %arg12[%c4_48, %c0_49], %103 {strides = array<i32>} : memref<16x32xbf16, #tpu.memory_space<vmem>>, vector<2x32xbf16>,
    %105 = vector.extract_strided_slice %35 {offsets = [6, 0], sizes = [2, 128], strides = [1, 1]} : vector<16x128xf32> to vector<2x128xf32>
    %106 = arith.truncf %102 : vector<2x32xf32> to vector<2x32xbf16>
    %cst_50 = arith.constant dense<0.000000e+00> : vector<2x128xf32>
    %107 = tpu.matmul %106, %36, %cst_50 {dimension_numbers = #tpu.dot_dimension_numbers<[1], [0], [0], [1], [0, 0, 1, 1], [], []>} : vector<2x32xbf16>, vector<32x128xbf16>, vector<2x128xf32> -> vector<2x128xf32>
    %108 = arith.addf %105, %107 : vector<2x128xf32>
    %109 = math.tanh %108 : vector<2x128xf32>
    %110 = arith.negf %108 : vector<2x128xf32>
    %111 = math.exp %110 : vector<2x128xf32>
    %cst_51 = arith.constant 1.000000e+00 : f32
    %112 = vector.broadcast %cst_51 : f32 to vector<2x128xf32>
    %113 = arith.addf %112, %111 : vector<2x128xf32>
    %114 = arith.divf %112, %113 : vector<2x128xf32>
    %115 = arith.select %5, %109, %114 : vector<2x128xi1>, vector<2x128xf32>
    %116 = vector.extract_strided_slice %115 {offsets = [0, 0], sizes = [2, 32], strides = [1, 1]} : vector<2x128xf32> to vector<2x32xf32>
    %117 = vector.extract_strided_slice %115 {offsets = [0, 32], sizes = [2, 32], strides = [1, 1]} : vector<2x128xf32> to vector<2x32xf32>
    %118 = vector.extract_strided_slice %115 {offsets = [0, 64], sizes = [2, 32], strides = [1, 1]} : vector<2x128xf32> to vector<2x32xf32>
    %119 = vector.extract_strided_slice %115 {offsets = [0, 96], sizes = [2, 32], strides = [1, 1]} : vector<2x128xf32> to vector<2x32xf32>
    %120 = arith.mulf %117, %100 : vector<2x32xf32>
    %121 = arith.mulf %116, %118 : vector<2x32xf32>
    %122 = arith.addf %120, %121 : vector<2x32xf32>
    %123 = math.tanh %122 : vector<2x32xf32>
    %124 = arith.mulf %119, %123 : vector<2x32xf32>
    %125 = arith.truncf %124 : vector<2x32xf32> to vector<2x32xbf16>
    %c6_52 = arith.constant 6 : index
    %c0_53 = arith.constant 0 : index
    %126 = vector.load %arg12[%c6_52, %c0_53] : memref<16x32xbf16, #tpu.memory_space<vmem>>, vector<2x32xbf16>
    tpu.vector_store %arg12[%c6_52, %c0_53], %125 {strides = array<i32>} : memref<16x32xbf16, #tpu.memory_space<vmem>>, vector<2x32xbf16>,
    %127 = vector.extract_strided_slice %35 {offsets = [8, 0], sizes = [2, 128], strides = [1, 1]} : vector<16x128xf32> to vector<2x128xf32>
    %128 = arith.truncf %124 : vector<2x32xf32> to vector<2x32xbf16>
    %cst_54 = arith.constant dense<0.000000e+00> : vector<2x128xf32>
    %129 = tpu.matmul %128, %36, %cst_54 {dimension_numbers = #tpu.dot_dimension_numbers<[1], [0], [0], [1], [0, 0, 1, 1], [], []>} : vector<2x32xbf16>, vector<32x128xbf16>, vector<2x128xf32> -> vector<2x128xf32>
    %130 = arith.addf %127, %129 : vector<2x128xf32>
    %131 = math.tanh %130 : vector<2x128xf32>
    %132 = arith.negf %130 : vector<2x128xf32>
    %133 = math.exp %132 : vector<2x128xf32>
    %cst_55 = arith.constant 1.000000e+00 : f32
    %134 = vector.broadcast %cst_55 : f32 to vector<2x128xf32>
    %135 = arith.addf %134, %133 : vector<2x128xf32>
    %136 = arith.divf %134, %135 : vector<2x128xf32>
    %137 = arith.select %5, %131, %136 : vector<2x128xi1>, vector<2x128xf32>
    %138 = vector.extract_strided_slice %137 {offsets = [0, 0], sizes = [2, 32], strides = [1, 1]} : vector<2x128xf32> to vector<2x32xf32>
    %139 = vector.extract_strided_slice %137 {offsets = [0, 32], sizes = [2, 32], strides = [1, 1]} : vector<2x128xf32> to vector<2x32xf32>
    %140 = vector.extract_strided_slice %137 {offsets = [0, 64], sizes = [2, 32], strides = [1, 1]} : vector<2x128xf32> to vector<2x32xf32>
    %141 = vector.extract_strided_slice %137 {offsets = [0, 96], sizes = [2, 32], strides = [1, 1]} : vector<2x128xf32> to vector<2x32xf32>
    %142 = arith.mulf %139, %122 : vector<2x32xf32>
    %143 = arith.mulf %138, %140 : vector<2x32xf32>
    %144 = arith.addf %142, %143 : vector<2x32xf32>
    %145 = math.tanh %144 : vector<2x32xf32>
    %146 = arith.mulf %141, %145 : vector<2x32xf32>
    %147 = arith.truncf %146 : vector<2x32xf32> to vector<2x32xbf16>
    %c8_56 = arith.constant 8 : index
    %c0_57 = arith.constant 0 : index
    %148 = vector.load %arg12[%c8_56, %c0_57] : memref<16x32xbf16, #tpu.memory_space<vmem>>, vector<2x32xbf16>
    tpu.vector_store %arg12[%c8_56, %c0_57], %147 {strides = array<i32>} : memref<16x32xbf16, #tpu.memory_space<vmem>>, vector<2x32xbf16>,
    %149 = vector.extract_strided_slice %35 {offsets = [10, 0], sizes = [2, 128], strides = [1, 1]} : vector<16x128xf32> to vector<2x128xf32>
    %150 = arith.truncf %146 : vector<2x32xf32> to vector<2x32xbf16>
    %cst_58 = arith.constant dense<0.000000e+00> : vector<2x128xf32>
    %151 = tpu.matmul %150, %36, %cst_58 {dimension_numbers = #tpu.dot_dimension_numbers<[1], [0], [0], [1], [0, 0, 1, 1], [], []>} : vector<2x32xbf16>, vector<32x128xbf16>, vector<2x128xf32> -> vector<2x128xf32>
    %152 = arith.addf %149, %151 : vector<2x128xf32>
    %153 = math.tanh %152 : vector<2x128xf32>
    %154 = arith.negf %152 : vector<2x128xf32>
    %155 = math.exp %154 : vector<2x128xf32>
    %cst_59 = arith.constant 1.000000e+00 : f32
    %156 = vector.broadcast %cst_59 : f32 to vector<2x128xf32>
    %157 = arith.addf %156, %155 : vector<2x128xf32>
    %158 = arith.divf %156, %157 : vector<2x128xf32>
    %159 = arith.select %5, %153, %158 : vector<2x128xi1>, vector<2x128xf32>
    %160 = vector.extract_strided_slice %159 {offsets = [0, 0], sizes = [2, 32], strides = [1, 1]} : vector<2x128xf32> to vector<2x32xf32>
    %161 = vector.extract_strided_slice %159 {offsets = [0, 32], sizes = [2, 32], strides = [1, 1]} : vector<2x128xf32> to vector<2x32xf32>
    %162 = vector.extract_strided_slice %159 {offsets = [0, 64], sizes = [2, 32], strides = [1, 1]} : vector<2x128xf32> to vector<2x32xf32>
    %163 = vector.extract_strided_slice %159 {offsets = [0, 96], sizes = [2, 32], strides = [1, 1]} : vector<2x128xf32> to vector<2x32xf32>
    %164 = arith.mulf %161, %144 : vector<2x32xf32>
    %165 = arith.mulf %160, %162 : vector<2x32xf32>
    %166 = arith.addf %164, %165 : vector<2x32xf32>
    %167 = math.tanh %166 : vector<2x32xf32>
    %168 = arith.mulf %163, %167 : vector<2x32xf32>
    %169 = arith.truncf %168 : vector<2x32xf32> to vector<2x32xbf16>
    %c10_60 = arith.constant 10 : index
    %c0_61 = arith.constant 0 : index
    %170 = vector.load %arg12[%c10_60, %c0_61] : memref<16x32xbf16, #tpu.memory_space<vmem>>, vector<2x32xbf16>
    tpu.vector_store %arg12[%c10_60, %c0_61], %169 {strides = array<i32>} : memref<16x32xbf16, #tpu.memory_space<vmem>>, vector<2x32xbf16>,
    %171 = vector.extract_strided_slice %35 {offsets = [12, 0], sizes = [2, 128], strides = [1, 1]} : vector<16x128xf32> to vector<2x128xf32>
    %172 = arith.truncf %168 : vector<2x32xf32> to vector<2x32xbf16>
    %cst_62 = arith.constant dense<0.000000e+00> : vector<2x128xf32>
    %173 = tpu.matmul %172, %36, %cst_62 {dimension_numbers = #tpu.dot_dimension_numbers<[1], [0], [0], [1], [0, 0, 1, 1], [], []>} : vector<2x32xbf16>, vector<32x128xbf16>, vector<2x128xf32> -> vector<2x128xf32>
    %174 = arith.addf %171, %173 : vector<2x128xf32>
    %175 = math.tanh %174 : vector<2x128xf32>
    %176 = arith.negf %174 : vector<2x128xf32>
    %177 = math.exp %176 : vector<2x128xf32>
    %cst_63 = arith.constant 1.000000e+00 : f32
    %178 = vector.broadcast %cst_63 : f32 to vector<2x128xf32>
    %179 = arith.addf %178, %177 : vector<2x128xf32>
    %180 = arith.divf %178, %179 : vector<2x128xf32>
    %181 = arith.select %5, %175, %180 : vector<2x128xi1>, vector<2x128xf32>
    %182 = vector.extract_strided_slice %181 {offsets = [0, 0], sizes = [2, 32], strides = [1, 1]} : vector<2x128xf32> to vector<2x32xf32>
    %183 = vector.extract_strided_slice %181 {offsets = [0, 32], sizes = [2, 32], strides = [1, 1]} : vector<2x128xf32> to vector<2x32xf32>
    %184 = vector.extract_strided_slice %181 {offsets = [0, 64], sizes = [2, 32], strides = [1, 1]} : vector<2x128xf32> to vector<2x32xf32>
    %185 = vector.extract_strided_slice %181 {offsets = [0, 96], sizes = [2, 32], strides = [1, 1]} : vector<2x128xf32> to vector<2x32xf32>
    %186 = arith.mulf %183, %166 : vector<2x32xf32>
    %187 = arith.mulf %182, %184 : vector<2x32xf32>
    %188 = arith.addf %186, %187 : vector<2x32xf32>
    %189 = math.tanh %188 : vector<2x32xf32>
    %190 = arith.mulf %185, %189 : vector<2x32xf32>
    %191 = arith.truncf %190 : vector<2x32xf32> to vector<2x32xbf16>
    %c12_64 = arith.constant 12 : index
    %c0_65 = arith.constant 0 : index
    %192 = vector.load %arg12[%c12_64, %c0_65] : memref<16x32xbf16, #tpu.memory_space<vmem>>, vector<2x32xbf16>
    tpu.vector_store %arg12[%c12_64, %c0_65], %191 {strides = array<i32>} : memref<16x32xbf16, #tpu.memory_space<vmem>>, vector<2x32xbf16>,
    %193 = vector.extract_strided_slice %35 {offsets = [14, 0], sizes = [2, 128], strides = [1, 1]} : vector<16x128xf32> to vector<2x128xf32>
    %194 = arith.truncf %190 : vector<2x32xf32> to vector<2x32xbf16>
    %cst_66 = arith.constant dense<0.000000e+00> : vector<2x128xf32>
    %195 = tpu.matmul %194, %36, %cst_66 {dimension_numbers = #tpu.dot_dimension_numbers<[1], [0], [0], [1], [0, 0, 1, 1], [], []>} : vector<2x32xbf16>, vector<32x128xbf16>, vector<2x128xf32> -> vector<2x128xf32>
    %196 = arith.addf %193, %195 : vector<2x128xf32>
    %197 = math.tanh %196 : vector<2x128xf32>
    %198 = arith.negf %196 : vector<2x128xf32>
    %199 = math.exp %198 : vector<2x128xf32>
    %cst_67 = arith.constant 1.000000e+00 : f32
    %200 = vector.broadcast %cst_67 : f32 to vector<2x128xf32>
    %201 = arith.addf %200, %199 : vector<2x128xf32>
    %202 = arith.divf %200, %201 : vector<2x128xf32>
    %203 = arith.select %5, %197, %202 : vector<2x128xi1>, vector<2x128xf32>
    %204 = vector.extract_strided_slice %203 {offsets = [0, 0], sizes = [2, 32], strides = [1, 1]} : vector<2x128xf32> to vector<2x32xf32>
    %205 = vector.extract_strided_slice %203 {offsets = [0, 32], sizes = [2, 32], strides = [1, 1]} : vector<2x128xf32> to vector<2x32xf32>
    %206 = vector.extract_strided_slice %203 {offsets = [0, 64], sizes = [2, 32], strides = [1, 1]} : vector<2x128xf32> to vector<2x32xf32>
    %207 = vector.extract_strided_slice %203 {offsets = [0, 96], sizes = [2, 32], strides = [1, 1]} : vector<2x128xf32> to vector<2x32xf32>
    %208 = arith.mulf %205, %188 : vector<2x32xf32>
    %209 = arith.mulf %204, %206 : vector<2x32xf32>
    %210 = arith.addf %208, %209 : vector<2x32xf32>
    %211 = math.tanh %210 : vector<2x32xf32>
    %212 = arith.mulf %207, %211 : vector<2x32xf32>
    %213 = arith.truncf %212 : vector<2x32xf32> to vector<2x32xbf16>
    %c14_68 = arith.constant 14 : index
    %c0_69 = arith.constant 0 : index
    %214 = vector.load %arg12[%c14_68, %c0_69] : memref<16x32xbf16, #tpu.memory_space<vmem>>, vector<2x32xbf16>
    tpu.vector_store %arg12[%c14_68, %c0_69], %213 {strides = array<i32>} : memref<16x32xbf16, #tpu.memory_space<vmem>>, vector<2x32xbf16>,
    %c0_70 = arith.constant 0 : index
    %c0_71 = arith.constant 0 : index
    %215 = vector.load %arg12[%c0_70, %c0_71] : memref<16x32xbf16, #tpu.memory_space<vmem>>, vector<16x32xbf16>
    %c0_72 = arith.constant 0 : index
    %c0_73 = arith.constant 0 : index
    %216 = vector.load %arg5[%c0_72, %c0_73] : memref<32x128xbf16, #tpu.memory_space<vmem>>, vector<32x128xbf16>
    %cst_74 = arith.constant dense<0.000000e+00> : vector<16x128xf32>
    %217 = tpu.matmul %215, %216, %cst_74 {dimension_numbers = #tpu.dot_dimension_numbers<[1], [0], [0], [1], [0, 0, 1, 1], [], []>} : vector<16x32xbf16>, vector<32x128xbf16>, vector<16x128xf32> -> vector<16x128xf32>
    %c0_75 = arith.constant 0 : index
    %c0_76 = arith.constant 0 : index
    %218 = vector.load %arg7[%c0_75, %c0_76] : memref<1x128xf32, #tpu.memory_space<vmem>>, vector<1x128xf32>
    %219 = vector.broadcast %218 : vector<1x128xf32> to vector<16x128xf32>
    %220 = arith.addf %217, %219 : vector<16x128xf32>
    %c0_77 = arith.constant 0 : index
    %c0_78 = arith.constant 0 : index
    %221 = vector.load %arg6[%c0_77, %c0_78] : memref<32x128xbf16, #tpu.memory_space<vmem>>, vector<32x128xbf16>
    %cst_79 = arith.constant 0.000000e+00 : f32
    %222 = vector.broadcast %cst_79 : f32 to vector<2x32xf32>
    %cst_80 = arith.constant 0.000000e+00 : f32
    %223 = vector.broadcast %cst_80 : f32 to vector<2x32xf32>
    %224 = vector.extract_strided_slice %220 {offsets = [0, 0], sizes = [2, 128], strides = [1, 1]} : vector<16x128xf32> to vector<2x128xf32>
    %225 = arith.truncf %222 : vector<2x32xf32> to vector<2x32xbf16>
    %cst_81 = arith.constant dense<0.000000e+00> : vector<2x128xf32>
    %226 = tpu.matmul %225, %221, %cst_81 {dimension_numbers = #tpu.dot_dimension_numbers<[1], [0], [0], [1], [0, 0, 1, 1], [], []>} : vector<2x32xbf16>, vector<32x128xbf16>, vector<2x128xf32> -> vector<2x128xf32>
    %227 = arith.addf %224, %226 : vector<2x128xf32>
    %228 = math.tanh %227 : vector<2x128xf32>
    %229 = arith.negf %227 : vector<2x128xf32>
    %230 = math.exp %229 : vector<2x128xf32>
    %cst_82 = arith.constant 1.000000e+00 : f32
    %231 = vector.broadcast %cst_82 : f32 to vector<2x128xf32>
    %232 = arith.addf %231, %230 : vector<2x128xf32>
    %233 = arith.divf %231, %232 : vector<2x128xf32>
    %234 = arith.select %5, %228, %233 : vector<2x128xi1>, vector<2x128xf32>
    %235 = vector.extract_strided_slice %234 {offsets = [0, 0], sizes = [2, 32], strides = [1, 1]} : vector<2x128xf32> to vector<2x32xf32>
    %236 = vector.extract_strided_slice %234 {offsets = [0, 32], sizes = [2, 32], strides = [1, 1]} : vector<2x128xf32> to vector<2x32xf32>
    %237 = vector.extract_strided_slice %234 {offsets = [0, 64], sizes = [2, 32], strides = [1, 1]} : vector<2x128xf32> to vector<2x32xf32>
    %238 = vector.extract_strided_slice %234 {offsets = [0, 96], sizes = [2, 32], strides = [1, 1]} : vector<2x128xf32> to vector<2x32xf32>
    %239 = arith.mulf %236, %223 : vector<2x32xf32>
    %240 = arith.mulf %235, %237 : vector<2x32xf32>
    %241 = arith.addf %239, %240 : vector<2x32xf32>
    %242 = math.tanh %241 : vector<2x32xf32>
    %243 = arith.mulf %238, %242 : vector<2x32xf32>
    %244 = vector.extract_strided_slice %220 {offsets = [2, 0], sizes = [2, 128], strides = [1, 1]} : vector<16x128xf32> to vector<2x128xf32>
    %245 = arith.truncf %243 : vector<2x32xf32> to vector<2x32xbf16>
    %cst_83 = arith.constant dense<0.000000e+00> : vector<2x128xf32>
    %246 = tpu.matmul %245, %221, %cst_83 {dimension_numbers = #tpu.dot_dimension_numbers<[1], [0], [0], [1], [0, 0, 1, 1], [], []>} : vector<2x32xbf16>, vector<32x128xbf16>, vector<2x128xf32> -> vector<2x128xf32>
    %247 = arith.addf %244, %246 : vector<2x128xf32>
    %248 = math.tanh %247 : vector<2x128xf32>
    %249 = arith.negf %247 : vector<2x128xf32>
    %250 = math.exp %249 : vector<2x128xf32>
    %cst_84 = arith.constant 1.000000e+00 : f32
    %251 = vector.broadcast %cst_84 : f32 to vector<2x128xf32>
    %252 = arith.addf %251, %250 : vector<2x128xf32>
    %253 = arith.divf %251, %252 : vector<2x128xf32>
    %254 = arith.select %5, %248, %253 : vector<2x128xi1>, vector<2x128xf32>
    %255 = vector.extract_strided_slice %254 {offsets = [0, 0], sizes = [2, 32], strides = [1, 1]} : vector<2x128xf32> to vector<2x32xf32>
    %256 = vector.extract_strided_slice %254 {offsets = [0, 32], sizes = [2, 32], strides = [1, 1]} : vector<2x128xf32> to vector<2x32xf32>
    %257 = vector.extract_strided_slice %254 {offsets = [0, 64], sizes = [2, 32], strides = [1, 1]} : vector<2x128xf32> to vector<2x32xf32>
    %258 = vector.extract_strided_slice %254 {offsets = [0, 96], sizes = [2, 32], strides = [1, 1]} : vector<2x128xf32> to vector<2x32xf32>
    %259 = arith.mulf %256, %241 : vector<2x32xf32>
    %260 = arith.mulf %255, %257 : vector<2x32xf32>
    %261 = arith.addf %259, %260 : vector<2x32xf32>
    %262 = math.tanh %261 : vector<2x32xf32>
    %263 = arith.mulf %258, %262 : vector<2x32xf32>
    %264 = vector.extract_strided_slice %220 {offsets = [4, 0], sizes = [2, 128], strides = [1, 1]} : vector<16x128xf32> to vector<2x128xf32>
    %265 = arith.truncf %263 : vector<2x32xf32> to vector<2x32xbf16>
    %cst_85 = arith.constant dense<0.000000e+00> : vector<2x128xf32>
    %266 = tpu.matmul %265, %221, %cst_85 {dimension_numbers = #tpu.dot_dimension_numbers<[1], [0], [0], [1], [0, 0, 1, 1], [], []>} : vector<2x32xbf16>, vector<32x128xbf16>, vector<2x128xf32> -> vector<2x128xf32>
    %267 = arith.addf %264, %266 : vector<2x128xf32>
    %268 = math.tanh %267 : vector<2x128xf32>
    %269 = arith.negf %267 : vector<2x128xf32>
    %270 = math.exp %269 : vector<2x128xf32>
    %cst_86 = arith.constant 1.000000e+00 : f32
    %271 = vector.broadcast %cst_86 : f32 to vector<2x128xf32>
    %272 = arith.addf %271, %270 : vector<2x128xf32>
    %273 = arith.divf %271, %272 : vector<2x128xf32>
    %274 = arith.select %5, %268, %273 : vector<2x128xi1>, vector<2x128xf32>
    %275 = vector.extract_strided_slice %274 {offsets = [0, 0], sizes = [2, 32], strides = [1, 1]} : vector<2x128xf32> to vector<2x32xf32>
    %276 = vector.extract_strided_slice %274 {offsets = [0, 32], sizes = [2, 32], strides = [1, 1]} : vector<2x128xf32> to vector<2x32xf32>
    %277 = vector.extract_strided_slice %274 {offsets = [0, 64], sizes = [2, 32], strides = [1, 1]} : vector<2x128xf32> to vector<2x32xf32>
    %278 = vector.extract_strided_slice %274 {offsets = [0, 96], sizes = [2, 32], strides = [1, 1]} : vector<2x128xf32> to vector<2x32xf32>
    %279 = arith.mulf %276, %261 : vector<2x32xf32>
    %280 = arith.mulf %275, %277 : vector<2x32xf32>
    %281 = arith.addf %279, %280 : vector<2x32xf32>
    %282 = math.tanh %281 : vector<2x32xf32>
    %283 = arith.mulf %278, %282 : vector<2x32xf32>
    %284 = vector.extract_strided_slice %220 {offsets = [6, 0], sizes = [2, 128], strides = [1, 1]} : vector<16x128xf32> to vector<2x128xf32>
    %285 = arith.truncf %283 : vector<2x32xf32> to vector<2x32xbf16>
    %cst_87 = arith.constant dense<0.000000e+00> : vector<2x128xf32>
    %286 = tpu.matmul %285, %221, %cst_87 {dimension_numbers = #tpu.dot_dimension_numbers<[1], [0], [0], [1], [0, 0, 1, 1], [], []>} : vector<2x32xbf16>, vector<32x128xbf16>, vector<2x128xf32> -> vector<2x128xf32>
    %287 = arith.addf %284, %286 : vector<2x128xf32>
    %288 = math.tanh %287 : vector<2x128xf32>
    %289 = arith.negf %287 : vector<2x128xf32>
    %290 = math.exp %289 : vector<2x128xf32>
    %cst_88 = arith.constant 1.000000e+00 : f32
    %291 = vector.broadcast %cst_88 : f32 to vector<2x128xf32>
    %292 = arith.addf %291, %290 : vector<2x128xf32>
    %293 = arith.divf %291, %292 : vector<2x128xf32>
    %294 = arith.select %5, %288, %293 : vector<2x128xi1>, vector<2x128xf32>
    %295 = vector.extract_strided_slice %294 {offsets = [0, 0], sizes = [2, 32], strides = [1, 1]} : vector<2x128xf32> to vector<2x32xf32>
    %296 = vector.extract_strided_slice %294 {offsets = [0, 32], sizes = [2, 32], strides = [1, 1]} : vector<2x128xf32> to vector<2x32xf32>
    %297 = vector.extract_strided_slice %294 {offsets = [0, 64], sizes = [2, 32], strides = [1, 1]} : vector<2x128xf32> to vector<2x32xf32>
    %298 = vector.extract_strided_slice %294 {offsets = [0, 96], sizes = [2, 32], strides = [1, 1]} : vector<2x128xf32> to vector<2x32xf32>
    %299 = arith.mulf %296, %281 : vector<2x32xf32>
    %300 = arith.mulf %295, %297 : vector<2x32xf32>
    %301 = arith.addf %299, %300 : vector<2x32xf32>
    %302 = math.tanh %301 : vector<2x32xf32>
    %303 = arith.mulf %298, %302 : vector<2x32xf32>
    %304 = vector.extract_strided_slice %220 {offsets = [8, 0], sizes = [2, 128], strides = [1, 1]} : vector<16x128xf32> to vector<2x128xf32>
    %305 = arith.truncf %303 : vector<2x32xf32> to vector<2x32xbf16>
    %cst_89 = arith.constant dense<0.000000e+00> : vector<2x128xf32>
    %306 = tpu.matmul %305, %221, %cst_89 {dimension_numbers = #tpu.dot_dimension_numbers<[1], [0], [0], [1], [0, 0, 1, 1], [], []>} : vector<2x32xbf16>, vector<32x128xbf16>, vector<2x128xf32> -> vector<2x128xf32>
    %307 = arith.addf %304, %306 : vector<2x128xf32>
    %308 = math.tanh %307 : vector<2x128xf32>
    %309 = arith.negf %307 : vector<2x128xf32>
    %310 = math.exp %309 : vector<2x128xf32>
    %cst_90 = arith.constant 1.000000e+00 : f32
    %311 = vector.broadcast %cst_90 : f32 to vector<2x128xf32>
    %312 = arith.addf %311, %310 : vector<2x128xf32>
    %313 = arith.divf %311, %312 : vector<2x128xf32>
    %314 = arith.select %5, %308, %313 : vector<2x128xi1>, vector<2x128xf32>
    %315 = vector.extract_strided_slice %314 {offsets = [0, 0], sizes = [2, 32], strides = [1, 1]} : vector<2x128xf32> to vector<2x32xf32>
    %316 = vector.extract_strided_slice %314 {offsets = [0, 32], sizes = [2, 32], strides = [1, 1]} : vector<2x128xf32> to vector<2x32xf32>
    %317 = vector.extract_strided_slice %314 {offsets = [0, 64], sizes = [2, 32], strides = [1, 1]} : vector<2x128xf32> to vector<2x32xf32>
    %318 = vector.extract_strided_slice %314 {offsets = [0, 96], sizes = [2, 32], strides = [1, 1]} : vector<2x128xf32> to vector<2x32xf32>
    %319 = arith.mulf %316, %301 : vector<2x32xf32>
    %320 = arith.mulf %315, %317 : vector<2x32xf32>
    %321 = arith.addf %319, %320 : vector<2x32xf32>
    %322 = math.tanh %321 : vector<2x32xf32>
    %323 = arith.mulf %318, %322 : vector<2x32xf32>
    %324 = vector.extract_strided_slice %220 {offsets = [10, 0], sizes = [2, 128], strides = [1, 1]} : vector<16x128xf32> to vector<2x128xf32>
    %325 = arith.truncf %323 : vector<2x32xf32> to vector<2x32xbf16>
    %cst_91 = arith.constant dense<0.000000e+00> : vector<2x128xf32>
    %326 = tpu.matmul %325, %221, %cst_91 {dimension_numbers = #tpu.dot_dimension_numbers<[1], [0], [0], [1], [0, 0, 1, 1], [], []>} : vector<2x32xbf16>, vector<32x128xbf16>, vector<2x128xf32> -> vector<2x128xf32>
    %327 = arith.addf %324, %326 : vector<2x128xf32>
    %328 = math.tanh %327 : vector<2x128xf32>
    %329 = arith.negf %327 : vector<2x128xf32>
    %330 = math.exp %329 : vector<2x128xf32>
    %cst_92 = arith.constant 1.000000e+00 : f32
    %331 = vector.broadcast %cst_92 : f32 to vector<2x128xf32>
    %332 = arith.addf %331, %330 : vector<2x128xf32>
    %333 = arith.divf %331, %332 : vector<2x128xf32>
    %334 = arith.select %5, %328, %333 : vector<2x128xi1>, vector<2x128xf32>
    %335 = vector.extract_strided_slice %334 {offsets = [0, 0], sizes = [2, 32], strides = [1, 1]} : vector<2x128xf32> to vector<2x32xf32>
    %336 = vector.extract_strided_slice %334 {offsets = [0, 32], sizes = [2, 32], strides = [1, 1]} : vector<2x128xf32> to vector<2x32xf32>
    %337 = vector.extract_strided_slice %334 {offsets = [0, 64], sizes = [2, 32], strides = [1, 1]} : vector<2x128xf32> to vector<2x32xf32>
    %338 = vector.extract_strided_slice %334 {offsets = [0, 96], sizes = [2, 32], strides = [1, 1]} : vector<2x128xf32> to vector<2x32xf32>
    %339 = arith.mulf %336, %321 : vector<2x32xf32>
    %340 = arith.mulf %335, %337 : vector<2x32xf32>
    %341 = arith.addf %339, %340 : vector<2x32xf32>
    %342 = math.tanh %341 : vector<2x32xf32>
    %343 = arith.mulf %338, %342 : vector<2x32xf32>
    %344 = vector.extract_strided_slice %220 {offsets = [12, 0], sizes = [2, 128], strides = [1, 1]} : vector<16x128xf32> to vector<2x128xf32>
    %345 = arith.truncf %343 : vector<2x32xf32> to vector<2x32xbf16>
    %cst_93 = arith.constant dense<0.000000e+00> : vector<2x128xf32>
    %346 = tpu.matmul %345, %221, %cst_93 {dimension_numbers = #tpu.dot_dimension_numbers<[1], [0], [0], [1], [0, 0, 1, 1], [], []>} : vector<2x32xbf16>, vector<32x128xbf16>, vector<2x128xf32> -> vector<2x128xf32>
    %347 = arith.addf %344, %346 : vector<2x128xf32>
    %348 = math.tanh %347 : vector<2x128xf32>
    %349 = arith.negf %347 : vector<2x128xf32>
    %350 = math.exp %349 : vector<2x128xf32>
    %cst_94 = arith.constant 1.000000e+00 : f32
    %351 = vector.broadcast %cst_94 : f32 to vector<2x128xf32>
    %352 = arith.addf %351, %350 : vector<2x128xf32>
    %353 = arith.divf %351, %352 : vector<2x128xf32>
    %354 = arith.select %5, %348, %353 : vector<2x128xi1>, vector<2x128xf32>
    %355 = vector.extract_strided_slice %354 {offsets = [0, 0], sizes = [2, 32], strides = [1, 1]} : vector<2x128xf32> to vector<2x32xf32>
    %356 = vector.extract_strided_slice %354 {offsets = [0, 32], sizes = [2, 32], strides = [1, 1]} : vector<2x128xf32> to vector<2x32xf32>
    %357 = vector.extract_strided_slice %354 {offsets = [0, 64], sizes = [2, 32], strides = [1, 1]} : vector<2x128xf32> to vector<2x32xf32>
    %358 = vector.extract_strided_slice %354 {offsets = [0, 96], sizes = [2, 32], strides = [1, 1]} : vector<2x128xf32> to vector<2x32xf32>
    %359 = arith.mulf %356, %341 : vector<2x32xf32>
    %360 = arith.mulf %355, %357 : vector<2x32xf32>
    %361 = arith.addf %359, %360 : vector<2x32xf32>
    %362 = math.tanh %361 : vector<2x32xf32>
    %363 = arith.mulf %358, %362 : vector<2x32xf32>
    %364 = vector.extract_strided_slice %220 {offsets = [14, 0], sizes = [2, 128], strides = [1, 1]} : vector<16x128xf32> to vector<2x128xf32>
    %365 = arith.truncf %363 : vector<2x32xf32> to vector<2x32xbf16>
    %cst_95 = arith.constant dense<0.000000e+00> : vector<2x128xf32>
    %366 = tpu.matmul %365, %221, %cst_95 {dimension_numbers = #tpu.dot_dimension_numbers<[1], [0], [0], [1], [0, 0, 1, 1], [], []>} : vector<2x32xbf16>, vector<32x128xbf16>, vector<2x128xf32> -> vector<2x128xf32>
    %367 = arith.addf %364, %366 : vector<2x128xf32>
    %368 = math.tanh %367 : vector<2x128xf32>
    %369 = arith.negf %367 : vector<2x128xf32>
    %370 = math.exp %369 : vector<2x128xf32>
    %cst_96 = arith.constant 1.000000e+00 : f32
    %371 = vector.broadcast %cst_96 : f32 to vector<2x128xf32>
    %372 = arith.addf %371, %370 : vector<2x128xf32>
    %373 = arith.divf %371, %372 : vector<2x128xf32>
    %374 = arith.select %5, %368, %373 : vector<2x128xi1>, vector<2x128xf32>
    %375 = vector.extract_strided_slice %374 {offsets = [0, 0], sizes = [2, 32], strides = [1, 1]} : vector<2x128xf32> to vector<2x32xf32>
    %376 = vector.extract_strided_slice %374 {offsets = [0, 32], sizes = [2, 32], strides = [1, 1]} : vector<2x128xf32> to vector<2x32xf32>
    %377 = vector.extract_strided_slice %374 {offsets = [0, 64], sizes = [2, 32], strides = [1, 1]} : vector<2x128xf32> to vector<2x32xf32>
    %378 = vector.extract_strided_slice %374 {offsets = [0, 96], sizes = [2, 32], strides = [1, 1]} : vector<2x128xf32> to vector<2x32xf32>
    %379 = arith.mulf %376, %361 : vector<2x32xf32>
    %380 = arith.mulf %375, %377 : vector<2x32xf32>
    %381 = arith.addf %379, %380 : vector<2x32xf32>
    %382 = math.tanh %381 : vector<2x32xf32>
    %383 = arith.mulf %378, %382 : vector<2x32xf32>
    %384 = arith.truncf %383 : vector<2x32xf32> to vector<2x32xbf16>
    %c0_97 = arith.constant 0 : index
    %c0_98 = arith.constant 0 : index
    %385 = vector.load %arg8[%c0_97, %c0_98] : memref<32x3xbf16, #tpu.memory_space<vmem>>, vector<32x3xbf16>
    %cst_99 = arith.constant dense<0.000000e+00> : vector<2x3xf32>
    %386 = tpu.matmul %384, %385, %cst_99 {dimension_numbers = #tpu.dot_dimension_numbers<[1], [0], [0], [1], [0, 0, 1, 1], [], []>} : vector<2x32xbf16>, vector<32x3xbf16>, vector<2x3xf32> -> vector<2x3xf32>
    %c0_100 = arith.constant 0 : index
    %c0_101 = arith.constant 0 : index
    %387 = vector.load %arg9[%c0_100, %c0_101] : memref<1x3xf32, #tpu.memory_space<vmem>>, vector<1x3xf32>
    %388 = vector.broadcast %387 : vector<1x3xf32> to vector<2x3xf32>
    %389 = arith.addf %386, %388 : vector<2x3xf32>
    %c0_102 = arith.constant 0 : index
    %c0_103 = arith.constant 0 : index
    %390 = vector.load %arg10[%c0_102, %c0_103] : memref<2x3xf32, #tpu.memory_space<vmem>>, vector<2x3xf32>
    tpu.vector_store %arg10[%c0_102, %c0_103], %389 {strides = array<i32>} : memref<2x3xf32, #tpu.memory_space<vmem>>, vector<2x3xf32>,
    return
  }
  func.func @transform_0(%arg0: i32) -> (i32, i32, i32) {
    %c0_i32 = arith.constant 0 : i32
    %c0_i32_0 = arith.constant 0 : i32
    %c0_i32_1 = arith.constant 0 : i32
    return %c0_i32, %arg0, %c0_i32_0 : i32, i32, i32
  }
  func.func @transform_1(%arg0: i32) -> (i32, i32) {
    %c0_i32 = arith.constant 0 : i32
    %c0_i32_0 = arith.constant 0 : i32
    %c0_i32_1 = arith.constant 0 : i32
    return %c0_i32, %c0_i32_0 : i32, i32
  }
  func.func @transform_2(%arg0: i32) -> (i32, i32) {
    %c0_i32 = arith.constant 0 : i32
    %c0_i32_0 = arith.constant 0 : i32
    %c0_i32_1 = arith.constant 0 : i32
    return %c0_i32, %c0_i32_0 : i32, i32
  }
  func.func @transform_3(%arg0: i32) -> (i32, i32) {
    %c0_i32 = arith.constant 0 : i32
    %c0_i32_0 = arith.constant 0 : i32
    %c0_i32_1 = arith.constant 0 : i32
    return %c0_i32, %c0_i32_0 : i32, i32
  }
  func.func @transform_4(%arg0: i32) -> (i32, i32) {
    %c0_i32 = arith.constant 0 : i32
    %c0_i32_0 = arith.constant 0 : i32
    %c0_i32_1 = arith.constant 0 : i32
    return %c0_i32, %c0_i32_0 : i32, i32
  }
  func.func @transform_5(%arg0: i32) -> (i32, i32) {
    %c0_i32 = arith.constant 0 : i32
    %c0_i32_0 = arith.constant 0 : i32
    %c0_i32_1 = arith.constant 0 : i32
    return %c0_i32, %c0_i32_0 : i32, i32
  }
  func.func @transform_6(%arg0: i32) -> (i32, i32) {
    %c0_i32 = arith.constant 0 : i32
    %c0_i32_0 = arith.constant 0 : i32
    %c0_i32_1 = arith.constant 0 : i32
    return %c0_i32, %c0_i32_0 : i32, i32
  }
  func.func @transform_7(%arg0: i32) -> (i32, i32) {
    %c0_i32 = arith.constant 0 : i32
    %c0_i32_0 = arith.constant 0 : i32
    %c0_i32_1 = arith.constant 0 : i32
    return %c0_i32, %c0_i32_0 : i32, i32
  }
  func.func @transform_8(%arg0: i32) -> (i32, i32) {
    %c0_i32 = arith.constant 0 : i32
    %c0_i32_0 = arith.constant 0 : i32
    %c0_i32_1 = arith.constant 0 : i32
    return %c0_i32, %c0_i32_0 : i32, i32
  }
  func.func @transform_9(%arg0: i32) -> (i32, i32) {
    %c0_i32 = arith.constant 0 : i32
    %c0_i32_0 = arith.constant 0 : i32
    return %arg0, %c0_i32 : i32, i32
  }
}

</mosaic_0001>

<llo_original>
// kernel: lstm_model_forward.1
$region0: #{lstm_model_forward.1}
  #allocation0 [shape = 'u32[]', space=smem, size = 0x4, offset = 0x4, fixed_abs, tag = 'smem constant byte address 0x4 - core index']
  #allocation1 [shape = 'u32[144,128]{1,0:T(1,128)}', space=vmem, size = 0x12000, scoped, tag = 'internal scratch']
  #allocation2 [shape = 'bf16[16,4]{1,0:T(8,128)(2,1)}', space=vmem, size = 0x1000, scoped, tag = 'scratch operand']
  #allocation3 [shape = 'bf16[16,32]{1,0:T(8,128)(2,1)}', space=vmem, size = 0x1000, scoped, tag = 'scratch operand']
  %s0 = inlined_call_operand.vmem [shape: bf16[8,2,4], index: 0, kind: input, shape index: {}]
  %s1 = inlined_call_operand.vmem [shape: bf16[4,128], index: 1, kind: input, shape index: {}]
  %s2 = inlined_call_operand.vmem [shape: bf16[32,128], index: 2, kind: input, shape index: {}]
  %s3 = inlined_call_operand.hbm [shape: f32[1,128], index: 3, kind: input, shape index: {}]
  %s4 = inlined_call_operand.vmem [shape: bf16[32,128], index: 4, kind: input, shape index: {}]
  %s5 = inlined_call_operand.vmem [shape: bf16[32,128], index: 5, kind: input, shape index: {}]
  %s6 = inlined_call_operand.hbm [shape: f32[1,128], index: 6, kind: input, shape index: {}]
  %s7 = inlined_call_operand.vmem [shape: bf16[32,3], index: 7, kind: input, shape index: {}]
  %s8 = inlined_call_operand.hbm [shape: f32[1,3], index: 8, kind: input, shape index: {}]
  %s9 = inlined_call_operand.hbm [shape: f32[2,3], index: 9, kind: output, shape index: {}]
  %s10 = sld [smem:[#allocation0]]
  $region58: #{lstm_model_forward.1} parent=0
    _
  %s12 = ssub.s32 1, %s10
  %s13 = scalar_select 0, %s12, %s10
  $region1: #{lstm_model_forward.1} parent=0
    #allocation4 [shape = 'u8[512]{0}', space=vmem, size = 0x400, scoped, tag = 'input window, operand 3, single buffered']
    #allocation5 [shape = 's32[1]{0}', space=sflag, size = 0x4, scoped, tag = 'scoped memory for lstm_model_forward.1']
    #allocation6 [shape = 's32[1]{0}', space=sflag, size = 0x4, scoped, tag = 'scoped memory for lstm_model_forward.1']
    #allocation7 [shape = 'u8[512]{0}', space=vmem, size = 0x400, scoped, tag = 'input window, operand 6, single buffered']
    #allocation8 [shape = 's32[1]{0}', space=sflag, size = 0x4, scoped, tag = 'scoped memory for lstm_model_forward.1']
    #allocation9 [shape = 'u8[512]{0}', space=vmem, size = 0x400, scoped, tag = 'input window, operand 8, single buffered']
    #allocation10 [shape = 'u8[1024]{0}', space=vmem, size = 0x400, scoped, tag = 'output window, operand 0, single buffered']
    %14 = vsyncpa [#allocation5], 0
    %15 = vsyncpa [#allocation8], 0
    %16 = vsyncpa [#allocation6], 0
    // Predicated region
    $region2: #{lstm_model_forward.1} parent=1 // pred_check
      _
    $region3: #{lstm_model_forward.1} parent=1 // pred_check_branch
      %18 = sbr.rel (0) target = $region5
    $region4: #{lstm_model_forward.1} parent=1 // pred_region
      _
    $region5: #{lstm_model_forward.1} parent=1 // pred_fallthru
      _
    // Predicated region
    $region6: #{lstm_model_forward.1} parent=1 // pred_check
      _
    $region7: #{lstm_model_forward.1} parent=1 // pred_check_branch
      %20 = sbr.rel (0) target = $region9
    $region8: #{lstm_model_forward.1} parent=1 // pred_region
      _
    $region9: #{lstm_model_forward.1} parent=1 // pred_fallthru
      _
    // Predicated region
    $region10: #{lstm_model_forward.1} parent=1 // pred_check
      _
    $region11: #{lstm_model_forward.1} parent=1 // pred_check_branch
      %22 = sbr.rel (0) target = $region13
    $region12: #{lstm_model_forward.1} parent=1 // pred_region
      _
    $region13: #{lstm_model_forward.1} parent=1 // pred_fallthru
      _
    // Predicated region
    $region14: #{lstm_model_forward.1} parent=1 // pred_check
      _
    $region15: #{lstm_model_forward.1} parent=1 // pred_check_branch
      %24 = sbr.rel (0) target = $region17
    $region16: #{lstm_model_forward.1} parent=1 // pred_region
      %s26 = ssub.s32 16, 16
      %27 = vsyncadd [#allocation5], %s26
      %s29 = sshll.u32 [#allocation4], 4
      %s30 = int_to_ptr.vmem [resolvable:$true] %s29
      %32 = dma.hbm_to_vmem [thread:$0]  %s3, 16, %s30, [#allocation5]
    $region17: #{lstm_model_forward.1} parent=1 // pred_fallthru
      _
    // Predicated region
    $region18: #{lstm_model_forward.1} parent=1 // pred_check
      _
    $region19: #{lstm_model_forward.1} parent=1 // pred_check_branch
      %34 = sbr.rel (0) target = $region21
    $region20: #{lstm_model_forward.1} parent=1 // pred_region
      _
    $region21: #{lstm_model_forward.1} parent=1 // pred_fallthru
      _
    // Predicated region
    $region22: #{lstm_model_forward.1} parent=1 // pred_check
      _
    $region23: #{lstm_model_forward.1} parent=1 // pred_check_branch
      %36 = sbr.rel (0) target = $region25
    $region24: #{lstm_model_forward.1} parent=1 // pred_region
      _
    $region25: #{lstm_model_forward.1} parent=1 // pred_fallthru
      _
    // Predicated region
    $region26: #{lstm_model_forward.1} parent=1 // pred_check
      _
    $region27: #{lstm_model_forward.1} parent=1 // pred_check_branch
      %38 = sbr.rel (0) target = $region29
    $region28: #{lstm_model_forward.1} parent=1 // pred_region
      %s40 = ssub.s32 16, 16
      %41 = vsyncadd [#allocation8], %s40
      %s43 = sshll.u32 [#allocation7], 4
      %s44 = int_to_ptr.vmem [resolvable:$true] %s43
      %46 = dma.hbm_to_vmem [thread:$0]  %s6, 16, %s44, [#allocation8]
    $region29: #{lstm_model_forward.1} parent=1 // pred_fallthru
      _
    // Predicated region
    $region30: #{lstm_model_forward.1} parent=1 // pred_check
      _
    $region31: #{lstm_model_forward.1} parent=1 // pred_check_branch
      %48 = sbr.rel (0) target = $region33
    $region32: #{lstm_model_forward.1} parent=1 // pred_region
      _
    $region33: #{lstm_model_forward.1} parent=1 // pred_fallthru
      _
    // Predicated region
    $region34: #{lstm_model_forward.1} parent=1 // pred_check
      _
    $region35: #{lstm_model_forward.1} parent=1 // pred_check_branch
      %50 = sbr.rel (0) target = $region37
    $region36: #{lstm_model_forward.1} parent=1 // pred_region
      %s52 = ssub.s32 16, 16
      %53 = vsyncadd [#allocation8], %s52
      %s55 = sshll.u32 [#allocation9], 4
      %s56 = int_to_ptr.vmem [resolvable:$true] %s55
      %58 = dma.hbm_to_vmem [thread:$0]  %s8, 16, %s56, [#allocation8]
    $region37: #{lstm_model_forward.1} parent=1 // pred_fallthru
      _
    // Predicated region
    $region38: #{lstm_model_forward.1} parent=1 // pred_check
      _
    $region39: #{lstm_model_forward.1} parent=1 // pred_check_branch
      %60 = sbr.rel (0) target = $region41
    $region40: #{lstm_model_forward.1} parent=1 // pred_region
      %61 = dma.done [#allocation5], 16
    $region41: #{lstm_model_forward.1} parent=1 // pred_fallthru
      _
    // Predicated region
    $region42: #{lstm_model_forward.1} parent=1 // pred_check
      _
    $region43: #{lstm_model_forward.1} parent=1 // pred_check_branch
      %63 = sbr.rel (0) target = $region45
    $region44: #{lstm_model_forward.1} parent=1 // pred_region
      %64 = dma.done [#allocation8], 16
    $region45: #{lstm_model_forward.1} parent=1 // pred_fallthru
      _
    // Predicated region
    $region46: #{lstm_model_forward.1} parent=1 // pred_check
      _
    $region47: #{lstm_model_forward.1} parent=1 // pred_check_branch
      %66 = sbr.rel (0) target = $region49
    $region48: #{lstm_model_forward.1} parent=1 // pred_region
      %67 = dma.done [#allocation8], 16
    $region49: #{lstm_model_forward.1} parent=1 // pred_fallthru
      _
    %v69 = vlaneseq
    %v70 = vand.u32 %v69, 127
    %vm71 = vcmp.ge.s32.totalorder %v70, 64
    %vm72 = vcmp.lt.s32.totalorder %v70, 96
    %vm73 = vmand %vm71, %vm72
    %v74 = vld [vmem:[%s0] sm:$0x1]
    %vm75 = vcmask 24576
    %76 = vst.msk [vmem:[#allocation2] sm:$0x1] %vm75, %v74
    %s77 = scalar_lea.vmem %s0, 1
    %v78 = vld [vmem:[%s77] sm:$0x1]
    %v81 = vunpack.c.l.s4 1935823168
    %v82 = vunpack.c.0.s8 %v81
    %v83 = vlaneseq
    %v84 = vshrl.u32 %v83, 7
    %v85 = vsub.s32 %v82, %v84
    %v86 = vrot.slane %v78, %v85
    %v87 = vcombine.low %v86, %v86
    %v89 = vunpack.c.l.s4 1935823168
    %v90 = vunpack.c.0.s8 %v89
    %v91 = vlaneseq
    %v92 = vshrl.u32 %v91, 7
    %v93 = vsub.s32 %v90, %v92
    %v94 = vrot.slane %v87, %v93
    %vm96 = vcmask 25601
    %97 = vst.msk [vmem:[#allocation2] sm:$0x2] %vm96, %v94
    %s98 = scalar_lea.vmem %s0, 2
    %v99 = vld [vmem:[%s98] sm:$0x1]
    %v101 = vcombine.low %v99, %v99
    %v103 = vunpack.c.l.s4 1935823168
    %v104 = vunpack.c.0.s8 %v103
    %v105 = vlaneseq
    %v106 = vshrl.u32 %v105, 7
    %v107 = vsub.s32 %v104, %v106
    %v108 = vrot.slane %v101, %v107
    %v110 = vunpack.c.l.s4 1935823168
    %v111 = vunpack.c.0.s8 %v110
    %v112 = vlaneseq
    %v113 = vshrl.u32 %v112, 7
    %v114 = vsub.s32 %v111, %v113
    %v115 = vrot.slane %v108, %v114
    %vm117 = vcmask 26626
    %118 = vst.msk [vmem:[#allocation2] sm:$0x4] %vm117, %v115
    %s119 = scalar_lea.vmem %s0, 3
    %v120 = vld [vmem:[%s119] sm:$0x1]
    %v122 = vcombine.low %v120, %v120
    %v124 = vunpack.c.l.s4 1935823168
    %v125 = vunpack.c.0.s8 %v124
    %v126 = vlaneseq
    %v127 = vshrl.u32 %v126, 7
    %v128 = vsub.s32 %v125, %v127
    %v129 = vrot.slane %v122, %v128
    %v130 = vcombine.low %v129, %v129
    %v132 = vunpack.c.l.s4 1935823168
    %v133 = vunpack.c.0.s8 %v132
    %v134 = vlaneseq
    %v135 = vshrl.u32 %v134, 7
    %v136 = vsub.s32 %v133, %v135
    %v137 = vrot.slane %v130, %v136
    %vm139 = vcmask 27651
    %140 = vst.msk [vmem:[#allocation2] sm:$0x8] %vm139, %v137
    %s141 = scalar_lea.vmem %s0, 4
    %v142 = vld [vmem:[%s141] sm:$0x1]
    %143 = vst.msk [vmem:[#allocation2 + $0x4] sm:$0x1] %vm75, %v142
    %s144 = scalar_lea.vmem %s0, 5
    %v145 = vld [vmem:[%s144] sm:$0x1]
    %v148 = vunpack.c.l.s4 1935823168
    %v149 = vunpack.c.0.s8 %v148
    %v150 = vlaneseq
    %v151 = vshrl.u32 %v150, 7
    %v152 = vsub.s32 %v149, %v151
    %v153 = vrot.slane %v145, %v152
    %v154 = vcombine.low %v153, %v153
    %v156 = vunpack.c.l.s4 1935823168
    %v157 = vunpack.c.0.s8 %v156
    %v158 = vlaneseq
    %v159 = vshrl.u32 %v158, 7
    %v160 = vsub.s32 %v157, %v159
    %v161 = vrot.slane %v154, %v160
    %163 = vst.msk [vmem:[#allocation2 + $0x4] sm:$0x2] %vm96, %v161
    %s164 = scalar_lea.vmem %s0, 6
    %v165 = vld [vmem:[%s164] sm:$0x1]
    %v167 = vcombine.low %v165, %v165
    %v169 = vunpack.c.l.s4 1935823168
    %v170 = vunpack.c.0.s8 %v169
    %v171 = vlaneseq
    %v172 = vshrl.u32 %v171, 7
    %v173 = vsub.s32 %v170, %v172
    %v174 = vrot.slane %v167, %v173
    %v176 = vunpack.c.l.s4 1935823168
    %v177 = vunpack.c.0.s8 %v176
    %v178 = vlaneseq
    %v179 = vshrl.u32 %v178, 7
    %v180 = vsub.s32 %v177, %v179
    %v181 = vrot.slane %v174, %v180
    %183 = vst.msk [vmem:[#allocation2 + $0x4] sm:$0x4] %vm117, %v181
    %s184 = scalar_lea.vmem %s0, 7
    %v185 = vld [vmem:[%s184] sm:$0x1]
    %v187 = vcombine.low %v185, %v185
    %v189 = vunpack.c.l.s4 1935823168
    %v190 = vunpack.c.0.s8 %v189
    %v191 = vlaneseq
    %v192 = vshrl.u32 %v191, 7
    %v193 = vsub.s32 %v190, %v192
    %v194 = vrot.slane %v187, %v193
    %v195 = vcombine.low %v194, %v194
    %v197 = vunpack.c.l.s4 1935823168
    %v198 = vunpack.c.0.s8 %v197
    %v199 = vlaneseq
    %v200 = vshrl.u32 %v199, 7
    %v201 = vsub.s32 %v198, %v200
    %v202 = vrot.slane %v195, %v201
    %204 = vst.msk [vmem:[#allocation2 + $0x4] sm:$0x8] %vm139, %v202
    %v205 = vld [vmem:[#allocation2] sm:$0xf]
    %v206 = vld [vmem:[#allocation2 + $0x4] sm:$0xf]
    %v207 = vld [vmem:[%s1] sm:$0x3]
    %v208 = vld [vmem:[#allocation4] sm:$0x1]
    %v210 = vlaneseq
    %v211 = vshrl.u32 %v210, 7
    %v212 = vsub.s32 0, %v211
    %v213 = vrot.slane %v208, %v212
    %v217 = vunpack.c.l.b16 %v205
    %v218 = vunpack.c.l.b16 %v206
    %v219 = vpack.c.b16 %v218, %v217
    %vm220 = vcmask 31744
    %v222 = vsel %vm220, %v219, 0
    %vm224 = vcmask 1041408
    %v226 = vsel %vm224, %v207, 0
    %228 = vmatprep.subr.bf16.mxu0 0
    %229 = vmatpush1.bf16.msra.mxu0 0
    %230 = vmatprep.subr.bf16.mxu0 0
    %231 = vmatpush1.bf16.msra.mxu0 0
    %232 = vmatprep.subr.bf16.mxu0 0
    %233 = vmatpush1.bf16.msra.mxu0 0
    %234 = vmatprep.subr.bf16.mxu0 0
    %235 = vmatpush1.bf16.msra.mxu0 0
    %236 = vmatprep.subr.bf16.mxu0 0
    %237 = vmatpush1.bf16.msra.mxu0 0
    %238 = vmatprep.subr.bf16.mxu0 0
    %239 = vmatpush1.bf16.msra.mxu0 0
    %240 = vmatprep.subr.bf16.mxu0 0
    %241 = vmatpush1.bf16.msra.mxu0 0
    %242 = vmatprep.subr.bf16.mxu0 0
    %243 = vmatpush1.bf16.msra.mxu0 %v226
    %244 = vmatprep.subr.bf16.mxu0 0
    %245 = vmatpush2.bf16.msra.mxu0 0
    %246 = vmatprep.subr.bf16.mxu0 0
    %247 = vmatpush2.bf16.msra.mxu0 0
    %248 = vmatprep.subr.bf16.mxu0 0
    %249 = vmatpush2.bf16.msra.mxu0 0
    %250 = vmatprep.subr.bf16.mxu0 0
    %251 = vmatpush2.bf16.msra.mxu0 0
    %252 = vmatprep.subr.bf16.mxu0 0
    %253 = vmatpush2.bf16.msra.mxu0 0
    %254 = vmatprep.subr.bf16.mxu0 0
    %255 = vmatpush2.bf16.msra.mxu0 0
    %256 = vmatprep.subr.bf16.mxu0 0
    %257 = vmatpush2.bf16.msra.mxu0 0
    %258 = vmatprep.subr.bf16.mxu0 0
    %259 = vmatpush2.bf16.msra.mxu0 0
    %260 = vmatprep.mubr.bf16.mxu0 0
    %261 = vmatmul.mubr.bf16.gmra.mxu0 %v222
    %v262 = vpop.f32.mrf.mxu0
    %v263 = vadd.f32 %v213, %v262
    %v264 = vpop.f32.mrf.mxu0
    %v265 = vpop.f32.mrf.mxu0
    %v266 = vadd.f32 %v213, %v265
    %v267 = vpop.f32.mrf.mxu0
    %268 = vdwg.mxu0
    %v269 = vld [vmem:[%s2] sm:$0xf]
    %v270 = vld [vmem:[%s2 + $0x4] sm:$0xf]
    %v271 = vld [vmem:[%s2 + $0x8] sm:$0xf]
    %v272 = vld [vmem:[%s2 + $0xc] sm:$0xf]
    %v277 = vunpack.c.l.b16 %v269
    %v278 = vunpack.c.l.b16 %v270
    %v279 = vunpack.c.l.b16 %v271
    %v280 = vunpack.c.l.b16 %v272
    %v281 = vpack.c.b16 %v278, %v277
    %v282 = vpack.c.b16 %v280, %v279
    %vm285 = vcmask 261120
    %v287 = vsel %vm285, 0, 0
    %289 = vmatprep.subr.bf16.mxu0 0
    %290 = vmatpush1.bf16.msra.mxu0 0
    %291 = vmatprep.subr.bf16.mxu0 0
    %292 = vmatpush1.bf16.msra.mxu0 0
    %293 = vmatprep.subr.bf16.mxu0 0
    %294 = vmatpush1.bf16.msra.mxu0 0
    %295 = vmatprep.subr.bf16.mxu0 0
    %296 = vmatpush1.bf16.msra.mxu0 0
    %297 = vmatprep.subr.bf16.mxu0 0
    %298 = vmatpush1.bf16.msra.mxu0 0
    %299 = vmatprep.subr.bf16.mxu0 0
    %300 = vmatpush1.bf16.msra.mxu0 0
    %301 = vmatprep.subr.bf16.mxu0 0
    %302 = vmatpush1.bf16.msra.mxu0 %v282
    %303 = vmatprep.subr.bf16.mxu0 0
    %304 = vmatpush1.bf16.msra.mxu0 %v281
    %305 = vmatprep.subr.bf16.mxu0 0
    %306 = vmatpush2.bf16.msra.mxu0 0
    %307 = vmatprep.subr.bf16.mxu0 0
    %308 = vmatpush2.bf16.msra.mxu0 0
    %309 = vmatprep.subr.bf16.mxu0 0
    %310 = vmatpush2.bf16.msra.mxu0 0
    %311 = vmatprep.subr.bf16.mxu0 0
    %312 = vmatpush2.bf16.msra.mxu0 0
    %313 = vmatprep.subr.bf16.mxu0 0
    %314 = vmatpush2.bf16.msra.mxu0 0
    %315 = vmatprep.subr.bf16.mxu0 0
    %316 = vmatpush2.bf16.msra.mxu0 0
    %317 = vmatprep.subr.bf16.mxu0 0
    %318 = vmatpush2.bf16.msra.mxu0 0
    %319 = vmatprep.subr.bf16.mxu0 0
    %320 = vmatpush2.bf16.msra.mxu0 0
    %321 = vmatprep.mubr.bf16.mxu0 0
    %322 = vmatmul.mubr.bf16.gmra.mxu0 %v287
    %v323 = vpop.f32.mrf.mxu0
    %v324 = vadd.f32 0.0, %v323
    %v325 = vpop.f32.mrf.mxu0
    %v326 = vpop.f32.mrf.mxu0
    %v327 = vpop.f32.mrf.mxu0
    %328 = vdwg.mxu0
    %v329 = vadd.f32 %v263, %v324
    %v330 = vtanh.pop %v329
    %v331 = vxor.u32 %v329, 2147483648
    %v332 = vmul.f32 %v331, 1.442695
    %v333 = vpow.pop %v332
    %v334 = vadd.f32 %v333, 1.0
    %v335 = vrcp.pop %v334
    %v336 = vmul.f32 1.0, %v335
    %v337 = vsel %vm73, %v330, %v336
    %v338 = vmul.f32 %v337, 0.0
    %340 = vrot.lane.b32.xlu0 %v337, 64
    %v341 = vpop.permute.xlu0 %340
    %v343 = vmul.f32 %v337, %v341
    %345 = vrot.lane.b32.xlu0 %v343, 32
    %v346 = vpop.permute.xlu0 %345
    %v348 = vadd.f32 %v338, %v346
    %v349 = vtanh.pop %v348
    %351 = vrot.lane.b32.xlu0 %v349, 64
    %v352 = vpop.permute.xlu0 %351
    %v354 = vmul.f32 %v337, %v352
    %v355 = vpack.c.bf16 %v354, %v354
    %v357 = vunpack.c.l.b16 %v355
    %v358 = vpack.c.b16 %v357, %v357
    %359 = vrot.lane.b32.xlu0 %v358, 32
    %v360 = vpop.permute.xlu0 %359
    %vm362 = vcmask 253952
    %363 = vst.msk [vmem:[#allocation3] sm:$0x1] %vm362, %v360
    %364 = vrot.lane.b32.xlu0 %v355, 32
    %v365 = vpop.permute.xlu0 %364
    %v367 = vsel %vm285, %v365, 0
    %369 = vmatprep.subr.bf16.mxu0 0
    %370 = vmatpush1.bf16.msra.mxu0 0
    %371 = vmatprep.subr.bf16.mxu0 0
    %372 = vmatpush1.bf16.msra.mxu0 0
    %373 = vmatprep.subr.bf16.mxu0 0
    %374 = vmatpush1.bf16.msra.mxu0 0
    %375 = vmatprep.subr.bf16.mxu0 0
    %376 = vmatpush1.bf16.msra.mxu0 0
    %377 = vmatprep.subr.bf16.mxu0 0
    %378 = vmatpush1.bf16.msra.mxu0 0
    %379 = vmatprep.subr.bf16.mxu0 0
    %380 = vmatpush1.bf16.msra.mxu0 0
    %381 = vmatprep.subr.bf16.mxu0 0
    %382 = vmatpush1.bf16.msra.mxu0 %v282
    %383 = vmatprep.subr.bf16.mxu0 0
    %384 = vmatpush1.bf16.msra.mxu0 %v281
    %385 = vmatprep.subr.bf16.mxu0 0
    %386 = vmatpush2.bf16.msra.mxu0 0
    %387 = vmatprep.subr.bf16.mxu0 0
    %388 = vmatpush2.bf16.msra.mxu0 0
    %389 = vmatprep.subr.bf16.mxu0 0
    %390 = vmatpush2.bf16.msra.mxu0 0
    %391 = vmatprep.subr.bf16.mxu0 0
    %392 = vmatpush2.bf16.msra.mxu0 0
    %393 = vmatprep.subr.bf16.mxu0 0
    %394 = vmatpush2.bf16.msra.mxu0 0
    %395 = vmatprep.subr.bf16.mxu0 0
    %396 = vmatpush2.bf16.msra.mxu0 0
    %397 = vmatprep.subr.bf16.mxu0 0
    %398 = vmatpush2.bf16.msra.mxu0 0
    %399 = vmatprep.subr.bf16.mxu0 0
    %400 = vmatpush2.bf16.msra.mxu0 0
    %401 = vmatprep.mubr.bf16.mxu0 0
    %402 = vmatmul.mubr.bf16.gmra.mxu0 %v367
    %v403 = vpop.f32.mrf.mxu0
    %v404 = vadd.f32 0.0, %v403
    %v405 = vpop.f32.mrf.mxu0
    %v406 = vpop.f32.mrf.mxu0
    %v407 = vpop.f32.mrf.mxu0
    %408 = vdwg.mxu0
    %v410 = vrot.slane %v404, 6
    %v412 = vadd.f32 %v263, %v410
    %v413 = vtanh.pop %v412
    %v414 = vxor.u32 %v412, 2147483648
    %v415 = vmul.f32 %v414, 1.442695
    %v416 = vpow.pop %v415
    %v417 = vadd.f32 %v416, 1.0
    %v418 = vrcp.pop %v417
    %v419 = vmul.f32 1.0, %v418
    %v420 = vsel %vm73, %v413, %v419
    %v422 = vrot.slane %v348, 6
    %v424 = vmul.f32 %v420, %v422
    %426 = vrot.lane.b32.xlu0 %v420, 64
    %v427 = vpop.permute.xlu0 %426
    %v429 = vmul.f32 %v420, %v427
    %431 = vrot.lane.b32.xlu0 %v429, 32
    %v432 = vpop.permute.xlu0 %431
    %v434 = vadd.f32 %v424, %v432
    %v435 = vtanh.pop %v434
    %437 = vrot.lane.b32.xlu0 %v435, 64
    %v438 = vpop.permute.xlu0 %437
    %v440 = vmul.f32 %v420, %v438
    %v441 = vpack.c.bf16 %v440, %v440
    %v443 = vunpack.c.l.b16 %v441
    %v444 = vpack.c.b16 %v443, %v443
    %445 = vrot.lane.b32.xlu0 %v444, 32
    %v446 = vpop.permute.xlu0 %445
    %vm448 = vcmask 254977
    %449 = vst.msk [vmem:[#allocation3] sm:$0x2] %vm448, %v446
    %v450 = vrot.slane %v441, 1
    %451 = vrot.lane.b32.xlu0 %v450, 32
    %v452 = vpop.permute.xlu0 %451
    %v454 = vsel %vm285, %v452, 0
    %456 = vmatprep.subr.bf16.mxu0 0
    %457 = vmatpush1.bf16.msra.mxu0 0
    %458 = vmatprep.subr.bf16.mxu0 0
    %459 = vmatpush1.bf16.msra.mxu0 0
    %460 = vmatprep.subr.bf16.mxu0 0
    %461 = vmatpush1.bf16.msra.mxu0 0
    %462 = vmatprep.subr.bf16.mxu0 0
    %463 = vmatpush1.bf16.msra.mxu0 0
    %464 = vmatprep.subr.bf16.mxu0 0
    %465 = vmatpush1.bf16.msra.mxu0 0
    %466 = vmatprep.subr.bf16.mxu0 0
    %467 = vmatpush1.bf16.msra.mxu0 0
    %468 = vmatprep.subr.bf16.mxu0 0
    %469 = vmatpush1.bf16.msra.mxu0 %v282
    %470 = vmatprep.subr.bf16.mxu0 0
    %471 = vmatpush1.bf16.msra.mxu0 %v281
    %472 = vmatprep.subr.bf16.mxu0 0
    %473 = vmatpush2.bf16.msra.mxu0 0
    %474 = vmatprep.subr.bf16.mxu0 0
    %475 = vmatpush2.bf16.msra.mxu0 0
    %476 = vmatprep.subr.bf16.mxu0 0
    %477 = vmatpush2.bf16.msra.mxu0 0
    %478 = vmatprep.subr.bf16.mxu0 0
    %479 = vmatpush2.bf16.msra.mxu0 0
    %480 = vmatprep.subr.bf16.mxu0 0
    %481 = vmatpush2.bf16.msra.mxu0 0
    %482 = vmatprep.subr.bf16.mxu0 0
    %483 = vmatpush2.bf16.msra.mxu0 0
    %484 = vmatprep.subr.bf16.mxu0 0
    %485 = vmatpush2.bf16.msra.mxu0 0
    %486 = vmatprep.subr.bf16.mxu0 0
    %487 = vmatpush2.bf16.msra.mxu0 0
    %488 = vmatprep.mubr.bf16.mxu0 0
    %489 = vmatmul.mubr.bf16.gmra.mxu0 %v454
    %v490 = vpop.f32.mrf.mxu0
    %v491 = vadd.f32 0.0, %v490
    %v492 = vpop.f32.mrf.mxu0
    %v493 = vpop.f32.mrf.mxu0
    %v494 = vpop.f32.mrf.mxu0
    %495 = vdwg.mxu0
    %v497 = vrot.slane %v491, 4
    %v499 = vadd.f32 %v263, %v497
    %v500 = vtanh.pop %v499
    %v501 = vxor.u32 %v499, 2147483648
    %v502 = vmul.f32 %v501, 1.442695
    %v503 = vpow.pop %v502
    %v504 = vadd.f32 %v503, 1.0
    %v505 = vrcp.pop %v504
    %v506 = vmul.f32 1.0, %v505
    %v507 = vsel %vm73, %v500, %v506
    %v509 = vrot.slane %v434, 6
    %v511 = vmul.f32 %v507, %v509
    %513 = vrot.lane.b32.xlu0 %v507, 64
    %v514 = vpop.permute.xlu0 %513
    %v516 = vmul.f32 %v507, %v514
    %518 = vrot.lane.b32.xlu0 %v516, 32
    %v519 = vpop.permute.xlu0 %518
    %v521 = vadd.f32 %v511, %v519
    %v522 = vtanh.pop %v521
    %524 = vrot.lane.b32.xlu0 %v522, 64
    %v525 = vpop.permute.xlu0 %524
    %v527 = vmul.f32 %v507, %v525
    %v528 = vpack.c.bf16 %v527, %v527
    %v530 = vunpack.c.l.b16 %v528
    %v531 = vpack.c.b16 %v530, %v530
    %532 = vrot.lane.b32.xlu0 %v531, 32
    %v533 = vpop.permute.xlu0 %532
    %vm535 = vcmask 256002
    %536 = vst.msk [vmem:[#allocation3] sm:$0x4] %vm535, %v533
    %v537 = vrot.slane %v528, 2
    %538 = vrot.lane.b32.xlu0 %v537, 32
    %v539 = vpop.permute.xlu0 %538
    %v541 = vsel %vm285, %v539, 0
    %543 = vmatprep.subr.bf16.mxu0 0
    %544 = vmatpush1.bf16.msra.mxu0 0
    %545 = vmatprep.subr.bf16.mxu0 0
    %546 = vmatpush1.bf16.msra.mxu0 0
    %547 = vmatprep.subr.bf16.mxu0 0
    %548 = vmatpush1.bf16.msra.mxu0 0
    %549 = vmatprep.subr.bf16.mxu0 0
    %550 = vmatpush1.bf16.msra.mxu0 0
    %551 = vmatprep.subr.bf16.mxu0 0
    %552 = vmatpush1.bf16.msra.mxu0 0
    %553 = vmatprep.subr.bf16.mxu0 0
    %554 = vmatpush1.bf16.msra.mxu0 0
    %555 = vmatprep.subr.bf16.mxu0 0
    %556 = vmatpush1.bf16.msra.mxu0 %v282
    %557 = vmatprep.subr.bf16.mxu0 0
    %558 = vmatpush1.bf16.msra.mxu0 %v281
    %559 = vmatprep.subr.bf16.mxu0 0
    %560 = vmatpush2.bf16.msra.mxu0 0
    %561 = vmatprep.subr.bf16.mxu0 0
    %562 = vmatpush2.bf16.msra.mxu0 0
    %563 = vmatprep.subr.bf16.mxu0 0
    %564 = vmatpush2.bf16.msra.mxu0 0
    %565 = vmatprep.subr.bf16.mxu0 0
    %566 = vmatpush2.bf16.msra.mxu0 0
    %567 = vmatprep.subr.bf16.mxu0 0
    %568 = vmatpush2.bf16.msra.mxu0 0
    %569 = vmatprep.subr.bf16.mxu0 0
    %570 = vmatpush2.bf16.msra.mxu0 0
    %571 = vmatprep.subr.bf16.mxu0 0
    %572 = vmatpush2.bf16.msra.mxu0 0
    %573 = vmatprep.subr.bf16.mxu0 0
    %574 = vmatpush2.bf16.msra.mxu0 0
    %575 = vmatprep.mubr.bf16.mxu0 0
    %576 = vmatmul.mubr.bf16.gmra.mxu0 %v541
    %v577 = vpop.f32.mrf.mxu0
    %v578 = vadd.f32 0.0, %v577
    %v579 = vpop.f32.mrf.mxu0
    %v580 = vpop.f32.mrf.mxu0
    %v581 = vpop.f32.mrf.mxu0
    %582 = vdwg.mxu0
    %v584 = vrot.slane %v578, 2
    %v586 = vadd.f32 %v263, %v584
    %v587 = vtanh.pop %v586
    %v588 = vxor.u32 %v586, 2147483648
    %v589 = vmul.f32 %v588, 1.442695
    %v590 = vpow.pop %v589
    %v591 = vadd.f32 %v590, 1.0
    %v592 = vrcp.pop %v591
    %v593 = vmul.f32 1.0, %v592
    %v594 = vsel %vm73, %v587, %v593
    %v596 = vrot.slane %v521, 6
    %v598 = vmul.f32 %v594, %v596
    %600 = vrot.lane.b32.xlu0 %v594, 64
    %v601 = vpop.permute.xlu0 %600
    %v603 = vmul.f32 %v594, %v601
    %605 = vrot.lane.b32.xlu0 %v603, 32
    %v606 = vpop.permute.xlu0 %605
    %v608 = vadd.f32 %v598, %v606
    %v609 = vtanh.pop %v608
    %611 = vrot.lane.b32.xlu0 %v609, 64
    %v612 = vpop.permute.xlu0 %611
    %v614 = vmul.f32 %v594, %v612
    %v615 = vpack.c.bf16 %v614, %v614
    %v617 = vunpack.c.l.b16 %v615
    %v618 = vpack.c.b16 %v617, %v617
    %619 = vrot.lane.b32.xlu0 %v618, 32
    %v620 = vpop.permute.xlu0 %619
    %vm622 = vcmask 257027
    %623 = vst.msk [vmem:[#allocation3] sm:$0x8] %vm622, %v620
    %v624 = vrot.slane %v615, 3
    %625 = vrot.lane.b32.xlu0 %v624, 32
    %v626 = vpop.permute.xlu0 %625
    %v628 = vsel %vm285, %v626, 0
    %630 = vmatprep.subr.bf16.mxu0 0
    %631 = vmatpush1.bf16.msra.mxu0 0
    %632 = vmatprep.subr.bf16.mxu0 0
    %633 = vmatpush1.bf16.msra.mxu0 0
    %634 = vmatprep.subr.bf16.mxu0 0
    %635 = vmatpush1.bf16.msra.mxu0 0
    %636 = vmatprep.subr.bf16.mxu0 0
    %637 = vmatpush1.bf16.msra.mxu0 0
    %638 = vmatprep.subr.bf16.mxu0 0
    %639 = vmatpush1.bf16.msra.mxu0 0
    %640 = vmatprep.subr.bf16.mxu0 0
    %641 = vmatpush1.bf16.msra.mxu0 0
    %642 = vmatprep.subr.bf16.mxu0 0
    %643 = vmatpush1.bf16.msra.mxu0 %v282
    %644 = vmatprep.subr.bf16.mxu0 0
    %645 = vmatpush1.bf16.msra.mxu0 %v281
    %646 = vmatprep.subr.bf16.mxu0 0
    %647 = vmatpush2.bf16.msra.mxu0 0
    %648 = vmatprep.subr.bf16.mxu0 0
    %649 = vmatpush2.bf16.msra.mxu0 0
    %650 = vmatprep.subr.bf16.mxu0 0
    %651 = vmatpush2.bf16.msra.mxu0 0
    %652 = vmatprep.subr.bf16.mxu0 0
    %653 = vmatpush2.bf16.msra.mxu0 0
    %654 = vmatprep.subr.bf16.mxu0 0
    %655 = vmatpush2.bf16.msra.mxu0 0
    %656 = vmatprep.subr.bf16.mxu0 0
    %657 = vmatpush2.bf16.msra.mxu0 0
    %658 = vmatprep.subr.bf16.mxu0 0
    %659 = vmatpush2.bf16.msra.mxu0 0
    %660 = vmatprep.subr.bf16.mxu0 0
    %661 = vmatpush2.bf16.msra.mxu0 0
    %662 = vmatprep.mubr.bf16.mxu0 0
    %663 = vmatmul.mubr.bf16.gmra.mxu0 %v628
    %v664 = vpop.f32.mrf.mxu0
    %v665 = vadd.f32 0.0, %v664
    %v666 = vpop.f32.mrf.mxu0
    %v667 = vpop.f32.mrf.mxu0
    %v668 = vpop.f32.mrf.mxu0
    %669 = vdwg.mxu0
    %v670 = vadd.f32 %v266, %v665
    %v671 = vtanh.pop %v670
    %v672 = vxor.u32 %v670, 2147483648
    %v673 = vmul.f32 %v672, 1.442695
    %v674 = vpow.pop %v673
    %v675 = vadd.f32 %v674, 1.0
    %v676 = vrcp.pop %v675
    %v677 = vmul.f32 1.0, %v676
    %v678 = vsel %vm73, %v671, %v677
    %v680 = vrot.slane %v608, 6
    %v682 = vmul.f32 %v678, %v680
    %684 = vrot.lane.b32.xlu0 %v678, 64
    %v685 = vpop.permute.xlu0 %684
    %v687 = vmul.f32 %v678, %v685
    %689 = vrot.lane.b32.xlu0 %v687, 32
    %v690 = vpop.permute.xlu0 %689
    %v692 = vadd.f32 %v682, %v690
    %v693 = vtanh.pop %v692
    %695 = vrot.lane.b32.xlu0 %v693, 64
    %v696 = vpop.permute.xlu0 %695
    %v698 = vmul.f32 %v678, %v696
    %v699 = vpack.c.bf16 %v698, %v698
    %v701 = vunpack.c.l.b16 %v699
    %v702 = vpack.c.b16 %v701, %v701
    %703 = vrot.lane.b32.xlu0 %v702, 32
    %v704 = vpop.permute.xlu0 %703
    %706 = vst.msk [vmem:[#allocation3 + $0x4] sm:$0x1] %vm362, %v704
    %707 = vrot.lane.b32.xlu0 %v699, 32
    %v708 = vpop.permute.xlu0 %707
    %v710 = vsel %vm285, %v708, 0
    %712 = vmatprep.subr.bf16.mxu0 0
    %713 = vmatpush1.bf16.msra.mxu0 0
    %714 = vmatprep.subr.bf16.mxu0 0
    %715 = vmatpush1.bf16.msra.mxu0 0
    %716 = vmatprep.subr.bf16.mxu0 0
    %717 = vmatpush1.bf16.msra.mxu0 0
    %718 = vmatprep.subr.bf16.mxu0 0
    %719 = vmatpush1.bf16.msra.mxu0 0
    %720 = vmatprep.subr.bf16.mxu0 0
    %721 = vmatpush1.bf16.msra.mxu0 0
    %722 = vmatprep.subr.bf16.mxu0 0
    %723 = vmatpush1.bf16.msra.mxu0 0
    %724 = vmatprep.subr.bf16.mxu0 0
    %725 = vmatpush1.bf16.msra.mxu0 %v282
    %726 = vmatprep.subr.bf16.mxu0 0
    %727 = vmatpush1.bf16.msra.mxu0 %v281
    %728 = vmatprep.subr.bf16.mxu0 0
    %729 = vmatpush2.bf16.msra.mxu0 0
    %730 = vmatprep.subr.bf16.mxu0 0
    %731 = vmatpush2.bf16.msra.mxu0 0
    %732 = vmatprep.subr.bf16.mxu0 0
    %733 = vmatpush2.bf16.msra.mxu0 0
    %734 = vmatprep.subr.bf16.mxu0 0
    %735 = vmatpush2.bf16.msra.mxu0 0
    %736 = vmatprep.subr.bf16.mxu0 0
    %737 = vmatpush2.bf16.msra.mxu0 0
    %738 = vmatprep.subr.bf16.mxu0 0
    %739 = vmatpush2.bf16.msra.mxu0 0
    %740 = vmatprep.subr.bf16.mxu0 0
    %741 = vmatpush2.bf16.msra.mxu0 0
    %742 = vmatprep.subr.bf16.mxu0 0
    %743 = vmatpush2.bf16.msra.mxu0 0
    %744 = vmatprep.mubr.bf16.mxu0 0
    %745 = vmatmul.mubr.bf16.gmra.mxu0 %v710
    %v746 = vpop.f32.mrf.mxu0
    %v747 = vadd.f32 0.0, %v746
    %v748 = vpop.f32.mrf.mxu0
    %v749 = vpop.f32.mrf.mxu0
    %v750 = vpop.f32.mrf.mxu0
    %751 = vdwg.mxu0
    %v753 = vrot.slane %v747, 6
    %v755 = vadd.f32 %v266, %v753
    %v756 = vtanh.pop %v755
    %v757 = vxor.u32 %v755, 2147483648
    %v758 = vmul.f32 %v757, 1.442695
    %v759 = vpow.pop %v758
    %v760 = vadd.f32 %v759, 1.0
    %v761 = vrcp.pop %v760
    %v762 = vmul.f32 1.0, %v761
    %v763 = vsel %vm73, %v756, %v762
    %v765 = vrot.slane %v692, 6
    %v767 = vmul.f32 %v763, %v765
    %769 = vrot.lane.b32.xlu0 %v763, 64
    %v770 = vpop.permute.xlu0 %769
    %v772 = vmul.f32 %v763, %v770
    %774 = vrot.lane.b32.xlu0 %v772, 32
    %v775 = vpop.permute.xlu0 %774
    %v777 = vadd.f32 %v767, %v775
    %v778 = vtanh.pop %v777
    %780 = vrot.lane.b32.xlu0 %v778, 64
    %v781 = vpop.permute.xlu0 %780
    %v783 = vmul.f32 %v763, %v781
    %v784 = vpack.c.bf16 %v783, %v783
    %v786 = vunpack.c.l.b16 %v784
    %v787 = vpack.c.b16 %v786, %v786
    %788 = vrot.lane.b32.xlu0 %v787, 32
    %v789 = vpop.permute.xlu0 %788
    %791 = vst.msk [vmem:[#allocation3 + $0x4] sm:$0x2] %vm448, %v789
    %v792 = vrot.slane %v784, 1
    %793 = vrot.lane.b32.xlu0 %v792, 32
    %v794 = vpop.permute.xlu0 %793
    %v796 = vsel %vm285, %v794, 0
    %798 = vmatprep.subr.bf16.mxu0 0
    %799 = vmatpush1.bf16.msra.mxu0 0
    %800 = vmatprep.subr.bf16.mxu0 0
    %801 = vmatpush1.bf16.msra.mxu0 0
    %802 = vmatprep.subr.bf16.mxu0 0
    %803 = vmatpush1.bf16.msra.mxu0 0
    %804 = vmatprep.subr.bf16.mxu0 0
    %805 = vmatpush1.bf16.msra.mxu0 0
    %806 = vmatprep.subr.bf16.mxu0 0
    %807 = vmatpush1.bf16.msra.mxu0 0
    %808 = vmatprep.subr.bf16.mxu0 0
    %809 = vmatpush1.bf16.msra.mxu0 0
    %810 = vmatprep.subr.bf16.mxu0 0
    %811 = vmatpush1.bf16.msra.mxu0 %v282
    %812 = vmatprep.subr.bf16.mxu0 0
    %813 = vmatpush1.bf16.msra.mxu0 %v281
    %814 = vmatprep.subr.bf16.mxu0 0
    %815 = vmatpush2.bf16.msra.mxu0 0
    %816 = vmatprep.subr.bf16.mxu0 0
    %817 = vmatpush2.bf16.msra.mxu0 0
    %818 = vmatprep.subr.bf16.mxu0 0
    %819 = vmatpush2.bf16.msra.mxu0 0
    %820 = vmatprep.subr.bf16.mxu0 0
    %821 = vmatpush2.bf16.msra.mxu0 0
    %822 = vmatprep.subr.bf16.mxu0 0
    %823 = vmatpush2.bf16.msra.mxu0 0
    %824 = vmatprep.subr.bf16.mxu0 0
    %825 = vmatpush2.bf16.msra.mxu0 0
    %826 = vmatprep.subr.bf16.mxu0 0
    %827 = vmatpush2.bf16.msra.mxu0 0
    %828 = vmatprep.subr.bf16.mxu0 0
    %829 = vmatpush2.bf16.msra.mxu0 0
    %830 = vmatprep.mubr.bf16.mxu0 0
    %831 = vmatmul.mubr.bf16.gmra.mxu0 %v796
    %v832 = vpop.f32.mrf.mxu0
    %v833 = vadd.f32 0.0, %v832
    %v834 = vpop.f32.mrf.mxu0
    %v835 = vpop.f32.mrf.mxu0
    %v836 = vpop.f32.mrf.mxu0
    %837 = vdwg.mxu0
    %v839 = vrot.slane %v833, 4
    %v841 = vadd.f32 %v266, %v839
    %v842 = vtanh.pop %v841
    %v843 = vxor.u32 %v841, 2147483648
    %v844 = vmul.f32 %v843, 1.442695
    %v845 = vpow.pop %v844
    %v846 = vadd.f32 %v845, 1.0
    %v847 = vrcp.pop %v846
    %v848 = vmul.f32 1.0, %v847
    %v849 = vsel %vm73, %v842, %v848
    %v851 = vrot.slane %v777, 6
    %v853 = vmul.f32 %v849, %v851
    %855 = vrot.lane.b32.xlu0 %v849, 64
    %v856 = vpop.permute.xlu0 %855
    %v858 = vmul.f32 %v849, %v856
    %860 = vrot.lane.b32.xlu0 %v858, 32
    %v861 = vpop.permute.xlu0 %860
    %v863 = vadd.f32 %v853, %v861
    %v864 = vtanh.pop %v863
    %866 = vrot.lane.b32.xlu0 %v864, 64
    %v867 = vpop.permute.xlu0 %866
    %v869 = vmul.f32 %v849, %v867
    %v870 = vpack.c.bf16 %v869, %v869
    %v872 = vunpack.c.l.b16 %v870
    %v873 = vpack.c.b16 %v872, %v872
    %874 = vrot.lane.b32.xlu0 %v873, 32
    %v875 = vpop.permute.xlu0 %874
    %877 = vst.msk [vmem:[#allocation3 + $0x4] sm:$0x4] %vm535, %v875
    %v878 = vrot.slane %v870, 2
    %879 = vrot.lane.b32.xlu0 %v878, 32
    %v880 = vpop.permute.xlu0 %879
    %v882 = vsel %vm285, %v880, 0
    %884 = vmatprep.subr.bf16.mxu0 0
    %885 = vmatpush1.bf16.msra.mxu0 0
    %886 = vmatprep.subr.bf16.mxu0 0
    %887 = vmatpush1.bf16.msra.mxu0 0
    %888 = vmatprep.subr.bf16.mxu0 0
    %889 = vmatpush1.bf16.msra.mxu0 0
    %890 = vmatprep.subr.bf16.mxu0 0
    %891 = vmatpush1.bf16.msra.mxu0 0
    %892 = vmatprep.subr.bf16.mxu0 0
    %893 = vmatpush1.bf16.msra.mxu0 0
    %894 = vmatprep.subr.bf16.mxu0 0
    %895 = vmatpush1.bf16.msra.mxu0 0
    %896 = vmatprep.subr.bf16.mxu0 0
    %897 = vmatpush1.bf16.msra.mxu0 %v282
    %898 = vmatprep.subr.bf16.mxu0 0
    %899 = vmatpush1.bf16.msra.mxu0 %v281
    %900 = vmatprep.subr.bf16.mxu0 0
    %901 = vmatpush2.bf16.msra.mxu0 0
    %902 = vmatprep.subr.bf16.mxu0 0
    %903 = vmatpush2.bf16.msra.mxu0 0
    %904 = vmatprep.subr.bf16.mxu0 0
    %905 = vmatpush2.bf16.msra.mxu0 0
    %906 = vmatprep.subr.bf16.mxu0 0
    %907 = vmatpush2.bf16.msra.mxu0 0
    %908 = vmatprep.subr.bf16.mxu0 0
    %909 = vmatpush2.bf16.msra.mxu0 0
    %910 = vmatprep.subr.bf16.mxu0 0
    %911 = vmatpush2.bf16.msra.mxu0 0
    %912 = vmatprep.subr.bf16.mxu0 0
    %913 = vmatpush2.bf16.msra.mxu0 0
    %914 = vmatprep.subr.bf16.mxu0 0
    %915 = vmatpush2.bf16.msra.mxu0 0
    %916 = vmatprep.mubr.bf16.mxu0 0
    %917 = vmatmul.mubr.bf16.gmra.mxu0 %v882
    %v918 = vpop.f32.mrf.mxu0
    %v919 = vadd.f32 0.0, %v918
    %v920 = vpop.f32.mrf.mxu0
    %v921 = vpop.f32.mrf.mxu0
    %v922 = vpop.f32.mrf.mxu0
    %923 = vdwg.mxu0
    %v925 = vrot.slane %v919, 2
    %v927 = vadd.f32 %v266, %v925
    %v928 = vtanh.pop %v927
    %v929 = vxor.u32 %v927, 2147483648
    %v930 = vmul.f32 %v929, 1.442695
    %v931 = vpow.pop %v930
    %v932 = vadd.f32 %v931, 1.0
    %v933 = vrcp.pop %v932
    %v934 = vmul.f32 1.0, %v933
    %v935 = vsel %vm73, %v928, %v934
    %v937 = vrot.slane %v863, 6
    %v939 = vmul.f32 %v935, %v937
    %941 = vrot.lane.b32.xlu0 %v935, 64
    %v942 = vpop.permute.xlu0 %941
    %v944 = vmul.f32 %v935, %v942
    %946 = vrot.lane.b32.xlu0 %v944, 32
    %v947 = vpop.permute.xlu0 %946
    %v949 = vadd.f32 %v939, %v947
    %v950 = vtanh.pop %v949
    %952 = vrot.lane.b32.xlu0 %v950, 64
    %v953 = vpop.permute.xlu0 %952
    %v955 = vmul.f32 %v935, %v953
    %v956 = vpack.c.bf16 %v955, %v955
    %v958 = vunpack.c.l.b16 %v956
    %v959 = vpack.c.b16 %v958, %v958
    %960 = vrot.lane.b32.xlu0 %v959, 32
    %v961 = vpop.permute.xlu0 %960
    %963 = vst.msk [vmem:[#allocation3 + $0x4] sm:$0x8] %vm622, %v961
    %v964 = vld [vmem:[#allocation3] sm:$0xf]
    %v965 = vld [vmem:[#allocation3 + $0x4] sm:$0xf]
    %v966 = vld [vmem:[%s4] sm:$0xf]
    %v967 = vld [vmem:[%s4 + $0x4] sm:$0xf]
    %v968 = vld [vmem:[%s4 + $0x8] sm:$0xf]
    %v969 = vld [vmem:[%s4 + $0xc] sm:$0xf]
    %v970 = vld [vmem:[#allocation7] sm:$0x1]
    %v972 = vlaneseq
    %v973 = vshrl.u32 %v972, 7
    %v974 = vsub.s32 0, %v973
    %v975 = vrot.slane %v970, %v974
    %v979 = vunpack.c.l.b16 %v964
    %v980 = vunpack.c.l.b16 %v965
    %v981 = vpack.c.b16 %v980, %v979
    %v986 = vunpack.c.l.b16 %v966
    %v987 = vunpack.c.l.b16 %v967
    %v988 = vunpack.c.l.b16 %v968
    %v989 = vunpack.c.l.b16 %v969
    %v990 = vpack.c.b16 %v987, %v986
    %v991 = vpack.c.b16 %v989, %v988
    %v995 = vsel %vm285, %v981, 0
    %997 = vmatprep.subr.bf16.mxu0 0
    %998 = vmatpush1.bf16.msra.mxu0 0
    %999 = vmatprep.subr.bf16.mxu0 0
    %1000 = vmatpush1.bf16.msra.mxu0 0
    %1001 = vmatprep.subr.bf16.mxu0 0
    %1002 = vmatpush1.bf16.msra.mxu0 0
    %1003 = vmatprep.subr.bf16.mxu0 0
    %1004 = vmatpush1.bf16.msra.mxu0 0
    %1005 = vmatprep.subr.bf16.mxu0 0
    %1006 = vmatpush1.bf16.msra.mxu0 0
    %1007 = vmatprep.subr.bf16.mxu0 0
    %1008 = vmatpush1.bf16.msra.mxu0 0
    %1009 = vmatprep.subr.bf16.mxu0 0
    %1010 = vmatpush1.bf16.msra.mxu0 %v991
    %1011 = vmatprep.subr.bf16.mxu0 0
    %1012 = vmatpush1.bf16.msra.mxu0 %v990
    %1013 = vmatprep.subr.bf16.mxu0 0
    %1014 = vmatpush2.bf16.msra.mxu0 0
    %1015 = vmatprep.subr.bf16.mxu0 0
    %1016 = vmatpush2.bf16.msra.mxu0 0
    %1017 = vmatprep.subr.bf16.mxu0 0
    %1018 = vmatpush2.bf16.msra.mxu0 0
    %1019 = vmatprep.subr.bf16.mxu0 0
    %1020 = vmatpush2.bf16.msra.mxu0 0
    %1021 = vmatprep.subr.bf16.mxu0 0
    %1022 = vmatpush2.bf16.msra.mxu0 0
    %1023 = vmatprep.subr.bf16.mxu0 0
    %1024 = vmatpush2.bf16.msra.mxu0 0
    %1025 = vmatprep.subr.bf16.mxu0 0
    %1026 = vmatpush2.bf16.msra.mxu0 0
    %1027 = vmatprep.subr.bf16.mxu0 0
    %1028 = vmatpush2.bf16.msra.mxu0 0
    %1029 = vmatprep.mubr.bf16.mxu0 0
    %1030 = vmatmul.mubr.bf16.gmra.mxu0 %v995
    %v1031 = vpop.f32.mrf.mxu0
    %v1032 = vadd.f32 %v975, %v1031
    %v1033 = vpop.f32.mrf.mxu0
    %v1034 = vpop.f32.mrf.mxu0
    %v1035 = vadd.f32 %v975, %v1034
    %v1036 = vpop.f32.mrf.mxu0
    %1037 = vdwg.mxu0
    %v1038 = vld [vmem:[%s5] sm:$0xf]
    %v1039 = vld [vmem:[%s5 + $0x4] sm:$0xf]
    %v1040 = vld [vmem:[%s5 + $0x8] sm:$0xf]
    %v1041 = vld [vmem:[%s5 + $0xc] sm:$0xf]
    %v1046 = vunpack.c.l.b16 %v1038
    %v1047 = vunpack.c.l.b16 %v1039
    %v1048 = vunpack.c.l.b16 %v1040
    %v1049 = vunpack.c.l.b16 %v1041
    %v1050 = vpack.c.b16 %v1047, %v1046
    %v1051 = vpack.c.b16 %v1049, %v1048
    %1054 = vmatprep.subr.bf16.mxu0 0
    %1055 = vmatpush1.bf16.msra.mxu0 0
    %1056 = vmatprep.subr.bf16.mxu0 0
    %1057 = vmatpush1.bf16.msra.mxu0 0
    %1058 = vmatprep.subr.bf16.mxu0 0
    %1059 = vmatpush1.bf16.msra.mxu0 0
    %1060 = vmatprep.subr.bf16.mxu0 0
    %1061 = vmatpush1.bf16.msra.mxu0 0
    %1062 = vmatprep.subr.bf16.mxu0 0
    %1063 = vmatpush1.bf16.msra.mxu0 0
    %1064 = vmatprep.subr.bf16.mxu0 0
    %1065 = vmatpush1.bf16.msra.mxu0 0
    %1066 = vmatprep.subr.bf16.mxu0 0
    %1067 = vmatpush1.bf16.msra.mxu0 %v1051
    %1068 = vmatprep.subr.bf16.mxu0 0
    %1069 = vmatpush1.bf16.msra.mxu0 %v1050
    %1070 = vmatprep.subr.bf16.mxu0 0
    %1071 = vmatpush2.bf16.msra.mxu0 0
    %1072 = vmatprep.subr.bf16.mxu0 0
    %1073 = vmatpush2.bf16.msra.mxu0 0
    %1074 = vmatprep.subr.bf16.mxu0 0
    %1075 = vmatpush2.bf16.msra.mxu0 0
    %1076 = vmatprep.subr.bf16.mxu0 0
    %1077 = vmatpush2.bf16.msra.mxu0 0
    %1078 = vmatprep.subr.bf16.mxu0 0
    %1079 = vmatpush2.bf16.msra.mxu0 0
    %1080 = vmatprep.subr.bf16.mxu0 0
    %1081 = vmatpush2.bf16.msra.mxu0 0
    %1082 = vmatprep.subr.bf16.mxu0 0
    %1083 = vmatpush2.bf16.msra.mxu0 0
    %1084 = vmatprep.subr.bf16.mxu0 0
    %1085 = vmatpush2.bf16.msra.mxu0 0
    %1086 = vmatprep.mubr.bf16.mxu0 0
    %1087 = vmatmul.mubr.bf16.gmra.mxu0 %v287
    %v1088 = vpop.f32.mrf.mxu0
    %v1089 = vadd.f32 0.0, %v1088
    %v1090 = vpop.f32.mrf.mxu0
    %v1091 = vpop.f32.mrf.mxu0
    %v1092 = vpop.f32.mrf.mxu0
    %1093 = vdwg.mxu0
    %v1094 = vadd.f32 %v1032, %v1089
    %v1095 = vtanh.pop %v1094
    %v1096 = vxor.u32 %v1094, 2147483648
    %v1097 = vmul.f32 %v1096, 1.442695
    %v1098 = vpow.pop %v1097
    %v1099 = vadd.f32 %v1098, 1.0
    %v1100 = vrcp.pop %v1099
    %v1101 = vmul.f32 1.0, %v1100
    %v1102 = vsel %vm73, %v1095, %v1101
    %v1103 = vmul.f32 %v1102, 0.0
    %1105 = vrot.lane.b32.xlu0 %v1102, 64
    %v1106 = vpop.permute.xlu0 %1105
    %v1108 = vmul.f32 %v1102, %v1106
    %1110 = vrot.lane.b32.xlu0 %v1108, 32
    %v1111 = vpop.permute.xlu0 %1110
    %v1113 = vadd.f32 %v1103, %v1111
    %v1114 = vtanh.pop %v1113
    %1116 = vrot.lane.b32.xlu0 %v1114, 64
    %v1117 = vpop.permute.xlu0 %1116
    %v1119 = vmul.f32 %v1102, %v1117
    %v1120 = vpack.c.bf16 %v1119, %v1119
    %1122 = vrot.lane.b32.xlu0 %v1120, 32
    %v1123 = vpop.permute.xlu0 %1122
    %v1125 = vsel %vm285, %v1123, 0
    %1127 = vmatprep.subr.bf16.mxu0 0
    %1128 = vmatpush1.bf16.msra.mxu0 0
    %1129 = vmatprep.subr.bf16.mxu0 0
    %1130 = vmatpush1.bf16.msra.mxu0 0
    %1131 = vmatprep.subr.bf16.mxu0 0
    %1132 = vmatpush1.bf16.msra.mxu0 0
    %1133 = vmatprep.subr.bf16.mxu0 0
    %1134 = vmatpush1.bf16.msra.mxu0 0
    %1135 = vmatprep.subr.bf16.mxu0 0
    %1136 = vmatpush1.bf16.msra.mxu0 0
    %1137 = vmatprep.subr.bf16.mxu0 0
    %1138 = vmatpush1.bf16.msra.mxu0 0
    %1139 = vmatprep.subr.bf16.mxu0 0
    %1140 = vmatpush1.bf16.msra.mxu0 %v1051
    %1141 = vmatprep.subr.bf16.mxu0 0
    %1142 = vmatpush1.bf16.msra.mxu0 %v1050
    %1143 = vmatprep.subr.bf16.mxu0 0
    %1144 = vmatpush2.bf16.msra.mxu0 0
    %1145 = vmatprep.subr.bf16.mxu0 0
    %1146 = vmatpush2.bf16.msra.mxu0 0
    %1147 = vmatprep.subr.bf16.mxu0 0
    %1148 = vmatpush2.bf16.msra.mxu0 0
    %1149 = vmatprep.subr.bf16.mxu0 0
    %1150 = vmatpush2.bf16.msra.mxu0 0
    %1151 = vmatprep.subr.bf16.mxu0 0
    %1152 = vmatpush2.bf16.msra.mxu0 0
    %1153 = vmatprep.subr.bf16.mxu0 0
    %1154 = vmatpush2.bf16.msra.mxu0 0
    %1155 = vmatprep.subr.bf16.mxu0 0
    %1156 = vmatpush2.bf16.msra.mxu0 0
    %1157 = vmatprep.subr.bf16.mxu0 0
    %1158 = vmatpush2.bf16.msra.mxu0 0
    %1159 = vmatprep.mubr.bf16.mxu0 0
    %1160 = vmatmul.mubr.bf16.gmra.mxu0 %v1125
    %v1161 = vpop.f32.mrf.mxu0
    %v1162 = vadd.f32 0.0, %v1161
    %v1163 = vpop.f32.mrf.mxu0
    %v1164 = vpop.f32.mrf.mxu0
    %v1165 = vpop.f32.mrf.mxu0
    %1166 = vdwg.mxu0
    %v1168 = vrot.slane %v1162, 6
    %v1170 = vadd.f32 %v1032, %v1168
    %v1171 = vtanh.pop %v1170
    %v1172 = vxor.u32 %v1170, 2147483648
    %v1173 = vmul.f32 %v1172, 1.442695
    %v1174 = vpow.pop %v1173
    %v1175 = vadd.f32 %v1174, 1.0
    %v1176 = vrcp.pop %v1175
    %v1177 = vmul.f32 1.0, %v1176
    %v1178 = vsel %vm73, %v1171, %v1177
    %v1180 = vrot.slane %v1113, 6
    %v1182 = vmul.f32 %v1178, %v1180
    %1184 = vrot.lane.b32.xlu0 %v1178, 64
    %v1185 = vpop.permute.xlu0 %1184
    %v1187 = vmul.f32 %v1178, %v1185
    %1189 = vrot.lane.b32.xlu0 %v1187, 32
    %v1190 = vpop.permute.xlu0 %1189
    %v1192 = vadd.f32 %v1182, %v1190
    %v1193 = vtanh.pop %v1192
    %1195 = vrot.lane.b32.xlu0 %v1193, 64
    %v1196 = vpop.permute.xlu0 %1195
    %v1198 = vmul.f32 %v1178, %v1196
    %v1199 = vpack.c.bf16 %v1198, %v1198
    %v1201 = vrot.slane %v1199, 1
    %1202 = vrot.lane.b32.xlu0 %v1201, 32
    %v1203 = vpop.permute.xlu0 %1202
    %v1205 = vsel %vm285, %v1203, 0
    %1207 = vmatprep.subr.bf16.mxu0 0
    %1208 = vmatpush1.bf16.msra.mxu0 0
    %1209 = vmatprep.subr.bf16.mxu0 0
    %1210 = vmatpush1.bf16.msra.mxu0 0
    %1211 = vmatprep.subr.bf16.mxu0 0
    %1212 = vmatpush1.bf16.msra.mxu0 0
    %1213 = vmatprep.subr.bf16.mxu0 0
    %1214 = vmatpush1.bf16.msra.mxu0 0
    %1215 = vmatprep.subr.bf16.mxu0 0
    %1216 = vmatpush1.bf16.msra.mxu0 0
    %1217 = vmatprep.subr.bf16.mxu0 0
    %1218 = vmatpush1.bf16.msra.mxu0 0
    %1219 = vmatprep.subr.bf16.mxu0 0
    %1220 = vmatpush1.bf16.msra.mxu0 %v1051
    %1221 = vmatprep.subr.bf16.mxu0 0
    %1222 = vmatpush1.bf16.msra.mxu0 %v1050
    %1223 = vmatprep.subr.bf16.mxu0 0
    %1224 = vmatpush2.bf16.msra.mxu0 0
    %1225 = vmatprep.subr.bf16.mxu0 0
    %1226 = vmatpush2.bf16.msra.mxu0 0
    %1227 = vmatprep.subr.bf16.mxu0 0
    %1228 = vmatpush2.bf16.msra.mxu0 0
    %1229 = vmatprep.subr.bf16.mxu0 0
    %1230 = vmatpush2.bf16.msra.mxu0 0
    %1231 = vmatprep.subr.bf16.mxu0 0
    %1232 = vmatpush2.bf16.msra.mxu0 0
    %1233 = vmatprep.subr.bf16.mxu0 0
    %1234 = vmatpush2.bf16.msra.mxu0 0
    %1235 = vmatprep.subr.bf16.mxu0 0
    %1236 = vmatpush2.bf16.msra.mxu0 0
    %1237 = vmatprep.subr.bf16.mxu0 0
    %1238 = vmatpush2.bf16.msra.mxu0 0
    %1239 = vmatprep.mubr.bf16.mxu0 0
    %1240 = vmatmul.mubr.bf16.gmra.mxu0 %v1205
    %v1241 = vpop.f32.mrf.mxu0
    %v1242 = vadd.f32 0.0, %v1241
    %v1243 = vpop.f32.mrf.mxu0
    %v1244 = vpop.f32.mrf.mxu0
    %v1245 = vpop.f32.mrf.mxu0
    %1246 = vdwg.mxu0
    %v1248 = vrot.slane %v1242, 4
    %v1250 = vadd.f32 %v1032, %v1248
    %v1251 = vtanh.pop %v1250
    %v1252 = vxor.u32 %v1250, 2147483648
    %v1253 = vmul.f32 %v1252, 1.442695
    %v1254 = vpow.pop %v1253
    %v1255 = vadd.f32 %v1254, 1.0
    %v1256 = vrcp.pop %v1255
    %v1257 = vmul.f32 1.0, %v1256
    %v1258 = vsel %vm73, %v1251, %v1257
    %v1260 = vrot.slane %v1192, 6
    %v1262 = vmul.f32 %v1258, %v1260
    %1264 = vrot.lane.b32.xlu0 %v1258, 64
    %v1265 = vpop.permute.xlu0 %1264
    %v1267 = vmul.f32 %v1258, %v1265
    %1269 = vrot.lane.b32.xlu0 %v1267, 32
    %v1270 = vpop.permute.xlu0 %1269
    %v1272 = vadd.f32 %v1262, %v1270
    %v1273 = vtanh.pop %v1272
    %1275 = vrot.lane.b32.xlu0 %v1273, 64
    %v1276 = vpop.permute.xlu0 %1275
    %v1278 = vmul.f32 %v1258, %v1276
    %v1279 = vpack.c.bf16 %v1278, %v1278
    %v1281 = vrot.slane %v1279, 2
    %1282 = vrot.lane.b32.xlu0 %v1281, 32
    %v1283 = vpop.permute.xlu0 %1282
    %v1285 = vsel %vm285, %v1283, 0
    %1287 = vmatprep.subr.bf16.mxu0 0
    %1288 = vmatpush1.bf16.msra.mxu0 0
    %1289 = vmatprep.subr.bf16.mxu0 0
    %1290 = vmatpush1.bf16.msra.mxu0 0
    %1291 = vmatprep.subr.bf16.mxu0 0
    %1292 = vmatpush1.bf16.msra.mxu0 0
    %1293 = vmatprep.subr.bf16.mxu0 0
    %1294 = vmatpush1.bf16.msra.mxu0 0
    %1295 = vmatprep.subr.bf16.mxu0 0
    %1296 = vmatpush1.bf16.msra.mxu0 0
    %1297 = vmatprep.subr.bf16.mxu0 0
    %1298 = vmatpush1.bf16.msra.mxu0 0
    %1299 = vmatprep.subr.bf16.mxu0 0
    %1300 = vmatpush1.bf16.msra.mxu0 %v1051
    %1301 = vmatprep.subr.bf16.mxu0 0
    %1302 = vmatpush1.bf16.msra.mxu0 %v1050
    %1303 = vmatprep.subr.bf16.mxu0 0
    %1304 = vmatpush2.bf16.msra.mxu0 0
    %1305 = vmatprep.subr.bf16.mxu0 0
    %1306 = vmatpush2.bf16.msra.mxu0 0
    %1307 = vmatprep.subr.bf16.mxu0 0
    %1308 = vmatpush2.bf16.msra.mxu0 0
    %1309 = vmatprep.subr.bf16.mxu0 0
    %1310 = vmatpush2.bf16.msra.mxu0 0
    %1311 = vmatprep.subr.bf16.mxu0 0
    %1312 = vmatpush2.bf16.msra.mxu0 0
    %1313 = vmatprep.subr.bf16.mxu0 0
    %1314 = vmatpush2.bf16.msra.mxu0 0
    %1315 = vmatprep.subr.bf16.mxu0 0
    %1316 = vmatpush2.bf16.msra.mxu0 0
    %1317 = vmatprep.subr.bf16.mxu0 0
    %1318 = vmatpush2.bf16.msra.mxu0 0
    %1319 = vmatprep.mubr.bf16.mxu0 0
    %1320 = vmatmul.mubr.bf16.gmra.mxu0 %v1285
    %v1321 = vpop.f32.mrf.mxu0
    %v1322 = vadd.f32 0.0, %v1321
    %v1323 = vpop.f32.mrf.mxu0
    %v1324 = vpop.f32.mrf.mxu0
    %v1325 = vpop.f32.mrf.mxu0
    %1326 = vdwg.mxu0
    %v1328 = vrot.slane %v1322, 2
    %v1330 = vadd.f32 %v1032, %v1328
    %v1331 = vtanh.pop %v1330
    %v1332 = vxor.u32 %v1330, 2147483648
    %v1333 = vmul.f32 %v1332, 1.442695
    %v1334 = vpow.pop %v1333
    %v1335 = vadd.f32 %v1334, 1.0
    %v1336 = vrcp.pop %v1335
    %v1337 = vmul.f32 1.0, %v1336
    %v1338 = vsel %vm73, %v1331, %v1337
    %v1340 = vrot.slane %v1272, 6
    %v1342 = vmul.f32 %v1338, %v1340
    %1344 = vrot.lane.b32.xlu0 %v1338, 64
    %v1345 = vpop.permute.xlu0 %1344
    %v1347 = vmul.f32 %v1338, %v1345
    %1349 = vrot.lane.b32.xlu0 %v1347, 32
    %v1350 = vpop.permute.xlu0 %1349
    %v1352 = vadd.f32 %v1342, %v1350
    %v1353 = vtanh.pop %v1352
    %1355 = vrot.lane.b32.xlu0 %v1353, 64
    %v1356 = vpop.permute.xlu0 %1355
    %v1358 = vmul.f32 %v1338, %v1356
    %v1359 = vpack.c.bf16 %v1358, %v1358
    %v1361 = vrot.slane %v1359, 3
    %1362 = vrot.lane.b32.xlu0 %v1361, 32
    %v1363 = vpop.permute.xlu0 %1362
    %v1365 = vsel %vm285, %v1363, 0
    %1367 = vmatprep.subr.bf16.mxu0 0
    %1368 = vmatpush1.bf16.msra.mxu0 0
    %1369 = vmatprep.subr.bf16.mxu0 0
    %1370 = vmatpush1.bf16.msra.mxu0 0
    %1371 = vmatprep.subr.bf16.mxu0 0
    %1372 = vmatpush1.bf16.msra.mxu0 0
    %1373 = vmatprep.subr.bf16.mxu0 0
    %1374 = vmatpush1.bf16.msra.mxu0 0
    %1375 = vmatprep.subr.bf16.mxu0 0
    %1376 = vmatpush1.bf16.msra.mxu0 0
    %1377 = vmatprep.subr.bf16.mxu0 0
    %1378 = vmatpush1.bf16.msra.mxu0 0
    %1379 = vmatprep.subr.bf16.mxu0 0
    %1380 = vmatpush1.bf16.msra.mxu0 %v1051
    %1381 = vmatprep.subr.bf16.mxu0 0
    %1382 = vmatpush1.bf16.msra.mxu0 %v1050
    %1383 = vmatprep.subr.bf16.mxu0 0
    %1384 = vmatpush2.bf16.msra.mxu0 0
    %1385 = vmatprep.subr.bf16.mxu0 0
    %1386 = vmatpush2.bf16.msra.mxu0 0
    %1387 = vmatprep.subr.bf16.mxu0 0
    %1388 = vmatpush2.bf16.msra.mxu0 0
    %1389 = vmatprep.subr.bf16.mxu0 0
    %1390 = vmatpush2.bf16.msra.mxu0 0
    %1391 = vmatprep.subr.bf16.mxu0 0
    %1392 = vmatpush2.bf16.msra.mxu0 0
    %1393 = vmatprep.subr.bf16.mxu0 0
    %1394 = vmatpush2.bf16.msra.mxu0 0
    %1395 = vmatprep.subr.bf16.mxu0 0
    %1396 = vmatpush2.bf16.msra.mxu0 0
    %1397 = vmatprep.subr.bf16.mxu0 0
    %1398 = vmatpush2.bf16.msra.mxu0 0
    %1399 = vmatprep.mubr.bf16.mxu0 0
    %1400 = vmatmul.mubr.bf16.gmra.mxu0 %v1365
    %v1401 = vpop.f32.mrf.mxu0
    %v1402 = vadd.f32 0.0, %v1401
    %v1403 = vpop.f32.mrf.mxu0
    %v1404 = vpop.f32.mrf.mxu0
    %v1405 = vpop.f32.mrf.mxu0
    %1406 = vdwg.mxu0
    %v1407 = vadd.f32 %v1035, %v1402
    %v1408 = vtanh.pop %v1407
    %v1409 = vxor.u32 %v1407, 2147483648
    %v1410 = vmul.f32 %v1409, 1.442695
    %v1411 = vpow.pop %v1410
    %v1412 = vadd.f32 %v1411, 1.0
    %v1413 = vrcp.pop %v1412
    %v1414 = vmul.f32 1.0, %v1413
    %v1415 = vsel %vm73, %v1408, %v1414
    %v1417 = vrot.slane %v1352, 6
    %v1419 = vmul.f32 %v1415, %v1417
    %1421 = vrot.lane.b32.xlu0 %v1415, 64
    %v1422 = vpop.permute.xlu0 %1421
    %v1424 = vmul.f32 %v1415, %v1422
    %1426 = vrot.lane.b32.xlu0 %v1424, 32
    %v1427 = vpop.permute.xlu0 %1426
    %v1429 = vadd.f32 %v1419, %v1427
    %v1430 = vtanh.pop %v1429
    %1432 = vrot.lane.b32.xlu0 %v1430, 64
    %v1433 = vpop.permute.xlu0 %1432
    %v1435 = vmul.f32 %v1415, %v1433
    %v1436 = vpack.c.bf16 %v1435, %v1435
    %1438 = vrot.lane.b32.xlu0 %v1436, 32
    %v1439 = vpop.permute.xlu0 %1438
    %v1441 = vsel %vm285, %v1439, 0
    %1443 = vmatprep.subr.bf16.mxu0 0
    %1444 = vmatpush1.bf16.msra.mxu0 0
    %1445 = vmatprep.subr.bf16.mxu0 0
    %1446 = vmatpush1.bf16.msra.mxu0 0
    %1447 = vmatprep.subr.bf16.mxu0 0
    %1448 = vmatpush1.bf16.msra.mxu0 0
    %1449 = vmatprep.subr.bf16.mxu0 0
    %1450 = vmatpush1.bf16.msra.mxu0 0
    %1451 = vmatprep.subr.bf16.mxu0 0
    %1452 = vmatpush1.bf16.msra.mxu0 0
    %1453 = vmatprep.subr.bf16.mxu0 0
    %1454 = vmatpush1.bf16.msra.mxu0 0
    %1455 = vmatprep.subr.bf16.mxu0 0
    %1456 = vmatpush1.bf16.msra.mxu0 %v1051
    %1457 = vmatprep.subr.bf16.mxu0 0
    %1458 = vmatpush1.bf16.msra.mxu0 %v1050
    %1459 = vmatprep.subr.bf16.mxu0 0
    %1460 = vmatpush2.bf16.msra.mxu0 0
    %1461 = vmatprep.subr.bf16.mxu0 0
    %1462 = vmatpush2.bf16.msra.mxu0 0
    %1463 = vmatprep.subr.bf16.mxu0 0
    %1464 = vmatpush2.bf16.msra.mxu0 0
    %1465 = vmatprep.subr.bf16.mxu0 0
    %1466 = vmatpush2.bf16.msra.mxu0 0
    %1467 = vmatprep.subr.bf16.mxu0 0
    %1468 = vmatpush2.bf16.msra.mxu0 0
    %1469 = vmatprep.subr.bf16.mxu0 0
    %1470 = vmatpush2.bf16.msra.mxu0 0
    %1471 = vmatprep.subr.bf16.mxu0 0
    %1472 = vmatpush2.bf16.msra.mxu0 0
    %1473 = vmatprep.subr.bf16.mxu0 0
    %1474 = vmatpush2.bf16.msra.mxu0 0
    %1475 = vmatprep.mubr.bf16.mxu0 0
    %1476 = vmatmul.mubr.bf16.gmra.mxu0 %v1441
    %v1477 = vpop.f32.mrf.mxu0
    %v1478 = vadd.f32 0.0, %v1477
    %v1479 = vpop.f32.mrf.mxu0
    %v1480 = vpop.f32.mrf.mxu0
    %v1481 = vpop.f32.mrf.mxu0
    %1482 = vdwg.mxu0
    %v1484 = vrot.slane %v1478, 6
    %v1486 = vadd.f32 %v1035, %v1484
    %v1487 = vtanh.pop %v1486
    %v1488 = vxor.u32 %v1486, 2147483648
    %v1489 = vmul.f32 %v1488, 1.442695
    %v1490 = vpow.pop %v1489
    %v1491 = vadd.f32 %v1490, 1.0
    %v1492 = vrcp.pop %v1491
    %v1493 = vmul.f32 1.0, %v1492
    %v1494 = vsel %vm73, %v1487, %v1493
    %v1496 = vrot.slane %v1429, 6
    %v1498 = vmul.f32 %v1494, %v1496
    %1500 = vrot.lane.b32.xlu0 %v1494, 64
    %v1501 = vpop.permute.xlu0 %1500
    %v1503 = vmul.f32 %v1494, %v1501
    %1505 = vrot.lane.b32.xlu0 %v1503, 32
    %v1506 = vpop.permute.xlu0 %1505
    %v1508 = vadd.f32 %v1498, %v1506
    %v1509 = vtanh.pop %v1508
    %1511 = vrot.lane.b32.xlu0 %v1509, 64
    %v1512 = vpop.permute.xlu0 %1511
    %v1514 = vmul.f32 %v1494, %v1512
    %v1515 = vpack.c.bf16 %v1514, %v1514
    %v1517 = vrot.slane %v1515, 1
    %1518 = vrot.lane.b32.xlu0 %v1517, 32
    %v1519 = vpop.permute.xlu0 %1518
    %v1521 = vsel %vm285, %v1519, 0
    %1523 = vmatprep.subr.bf16.mxu0 0
    %1524 = vmatpush1.bf16.msra.mxu0 0
    %1525 = vmatprep.subr.bf16.mxu0 0
    %1526 = vmatpush1.bf16.msra.mxu0 0
    %1527 = vmatprep.subr.bf16.mxu0 0
    %1528 = vmatpush1.bf16.msra.mxu0 0
    %1529 = vmatprep.subr.bf16.mxu0 0
    %1530 = vmatpush1.bf16.msra.mxu0 0
    %1531 = vmatprep.subr.bf16.mxu0 0
    %1532 = vmatpush1.bf16.msra.mxu0 0
    %1533 = vmatprep.subr.bf16.mxu0 0
    %1534 = vmatpush1.bf16.msra.mxu0 0
    %1535 = vmatprep.subr.bf16.mxu0 0
    %1536 = vmatpush1.bf16.msra.mxu0 %v1051
    %1537 = vmatprep.subr.bf16.mxu0 0
    %1538 = vmatpush1.bf16.msra.mxu0 %v1050
    %1539 = vmatprep.subr.bf16.mxu0 0
    %1540 = vmatpush2.bf16.msra.mxu0 0
    %1541 = vmatprep.subr.bf16.mxu0 0
    %1542 = vmatpush2.bf16.msra.mxu0 0
    %1543 = vmatprep.subr.bf16.mxu0 0
    %1544 = vmatpush2.bf16.msra.mxu0 0
    %1545 = vmatprep.subr.bf16.mxu0 0
    %1546 = vmatpush2.bf16.msra.mxu0 0
    %1547 = vmatprep.subr.bf16.mxu0 0
    %1548 = vmatpush2.bf16.msra.mxu0 0
    %1549 = vmatprep.subr.bf16.mxu0 0
    %1550 = vmatpush2.bf16.msra.mxu0 0
    %1551 = vmatprep.subr.bf16.mxu0 0
    %1552 = vmatpush2.bf16.msra.mxu0 0
    %1553 = vmatprep.subr.bf16.mxu0 0
    %1554 = vmatpush2.bf16.msra.mxu0 0
    %1555 = vmatprep.mubr.bf16.mxu0 0
    %1556 = vmatmul.mubr.bf16.gmra.mxu0 %v1521
    %v1557 = vpop.f32.mrf.mxu0
    %v1558 = vadd.f32 0.0, %v1557
    %v1559 = vpop.f32.mrf.mxu0
    %v1560 = vpop.f32.mrf.mxu0
    %v1561 = vpop.f32.mrf.mxu0
    %1562 = vdwg.mxu0
    %v1564 = vrot.slane %v1558, 4
    %v1566 = vadd.f32 %v1035, %v1564
    %v1567 = vtanh.pop %v1566
    %v1568 = vxor.u32 %v1566, 2147483648
    %v1569 = vmul.f32 %v1568, 1.442695
    %v1570 = vpow.pop %v1569
    %v1571 = vadd.f32 %v1570, 1.0
    %v1572 = vrcp.pop %v1571
    %v1573 = vmul.f32 1.0, %v1572
    %v1574 = vsel %vm73, %v1567, %v1573
    %v1576 = vrot.slane %v1508, 6
    %v1578 = vmul.f32 %v1574, %v1576
    %1580 = vrot.lane.b32.xlu0 %v1574, 64
    %v1581 = vpop.permute.xlu0 %1580
    %v1583 = vmul.f32 %v1574, %v1581
    %1585 = vrot.lane.b32.xlu0 %v1583, 32
    %v1586 = vpop.permute.xlu0 %1585
    %v1588 = vadd.f32 %v1578, %v1586
    %v1589 = vtanh.pop %v1588
    %1591 = vrot.lane.b32.xlu0 %v1589, 64
    %v1592 = vpop.permute.xlu0 %1591
    %v1594 = vmul.f32 %v1574, %v1592
    %v1595 = vpack.c.bf16 %v1594, %v1594
    %v1597 = vrot.slane %v1595, 2
    %1598 = vrot.lane.b32.xlu0 %v1597, 32
    %v1599 = vpop.permute.xlu0 %1598
    %v1601 = vsel %vm285, %v1599, 0
    %1603 = vmatprep.subr.bf16.mxu0 0
    %1604 = vmatpush1.bf16.msra.mxu0 0
    %1605 = vmatprep.subr.bf16.mxu0 0
    %1606 = vmatpush1.bf16.msra.mxu0 0
    %1607 = vmatprep.subr.bf16.mxu0 0
    %1608 = vmatpush1.bf16.msra.mxu0 0
    %1609 = vmatprep.subr.bf16.mxu0 0
    %1610 = vmatpush1.bf16.msra.mxu0 0
    %1611 = vmatprep.subr.bf16.mxu0 0
    %1612 = vmatpush1.bf16.msra.mxu0 0
    %1613 = vmatprep.subr.bf16.mxu0 0
    %1614 = vmatpush1.bf16.msra.mxu0 0
    %1615 = vmatprep.subr.bf16.mxu0 0
    %1616 = vmatpush1.bf16.msra.mxu0 %v1051
    %1617 = vmatprep.subr.bf16.mxu0 0
    %1618 = vmatpush1.bf16.msra.mxu0 %v1050
    %1619 = vmatprep.subr.bf16.mxu0 0
    %1620 = vmatpush2.bf16.msra.mxu0 0
    %1621 = vmatprep.subr.bf16.mxu0 0
    %1622 = vmatpush2.bf16.msra.mxu0 0
    %1623 = vmatprep.subr.bf16.mxu0 0
    %1624 = vmatpush2.bf16.msra.mxu0 0
    %1625 = vmatprep.subr.bf16.mxu0 0
    %1626 = vmatpush2.bf16.msra.mxu0 0
    %1627 = vmatprep.subr.bf16.mxu0 0
    %1628 = vmatpush2.bf16.msra.mxu0 0
    %1629 = vmatprep.subr.bf16.mxu0 0
    %1630 = vmatpush2.bf16.msra.mxu0 0
    %1631 = vmatprep.subr.bf16.mxu0 0
    %1632 = vmatpush2.bf16.msra.mxu0 0
    %1633 = vmatprep.subr.bf16.mxu0 0
    %1634 = vmatpush2.bf16.msra.mxu0 0
    %1635 = vmatprep.mubr.bf16.mxu0 0
    %1636 = vmatmul.mubr.bf16.gmra.mxu0 %v1601
    %v1637 = vpop.f32.mrf.mxu0
    %v1638 = vadd.f32 0.0, %v1637
    %v1639 = vpop.f32.mrf.mxu0
    %v1640 = vpop.f32.mrf.mxu0
    %v1641 = vpop.f32.mrf.mxu0
    %1642 = vdwg.mxu0
    %v1644 = vrot.slane %v1638, 2
    %v1646 = vadd.f32 %v1035, %v1644
    %v1647 = vtanh.pop %v1646
    %v1648 = vxor.u32 %v1646, 2147483648
    %v1649 = vmul.f32 %v1648, 1.442695
    %v1650 = vpow.pop %v1649
    %v1651 = vadd.f32 %v1650, 1.0
    %v1652 = vrcp.pop %v1651
    %v1653 = vmul.f32 1.0, %v1652
    %v1654 = vsel %vm73, %v1647, %v1653
    %v1656 = vrot.slane %v1588, 6
    %v1658 = vmul.f32 %v1654, %v1656
    %1660 = vrot.lane.b32.xlu0 %v1654, 64
    %v1661 = vpop.permute.xlu0 %1660
    %v1663 = vmul.f32 %v1654, %v1661
    %1665 = vrot.lane.b32.xlu0 %v1663, 32
    %v1666 = vpop.permute.xlu0 %1665
    %v1668 = vadd.f32 %v1658, %v1666
    %v1669 = vtanh.pop %v1668
    %1671 = vrot.lane.b32.xlu0 %v1669, 64
    %v1672 = vpop.permute.xlu0 %1671
    %v1674 = vmul.f32 %v1654, %v1672
    %v1675 = vpack.c.bf16 %v1674, %v1674
    %v1676 = vld [vmem:[%s7] sm:$0xf]
    %v1677 = vld [vmem:[%s7 + $0x4] sm:$0xf]
    %v1678 = vld [vmem:[%s7 + $0x8] sm:$0xf]
    %v1679 = vld [vmem:[%s7 + $0xc] sm:$0xf]
    %v1680 = vld [vmem:[#allocation9] sm:$0x1]
    %v1682 = vlaneseq
    %v1683 = vshrl.u32 %v1682, 7
    %v1684 = vsub.s32 0, %v1683
    %v1685 = vrot.slane %v1680, %v1684
    %v1688 = vrot.slane %v1675, 3
    %1689 = vrot.lane.b32.xlu0 %v1688, 32
    %v1690 = vpop.permute.xlu0 %1689
    %v1695 = vunpack.c.l.b16 %v1676
    %v1696 = vunpack.c.l.b16 %v1677
    %v1697 = vunpack.c.l.b16 %v1678
    %v1698 = vunpack.c.l.b16 %v1679
    %v1699 = vpack.c.b16 %v1696, %v1695
    %v1700 = vpack.c.b16 %v1698, %v1697
    %v1704 = vsel %vm285, %v1690, 0
    %1706 = vmatprep.subr.bf16.mxu0 0
    %1707 = vmatpush1.bf16.msra.mxu0 0
    %1708 = vmatprep.subr.bf16.mxu0 0
    %1709 = vmatpush1.bf16.msra.mxu0 0
    %1710 = vmatprep.subr.bf16.mxu0 0
    %1711 = vmatpush1.bf16.msra.mxu0 0
    %1712 = vmatprep.subr.bf16.mxu0 0
    %1713 = vmatpush1.bf16.msra.mxu0 0
    %1714 = vmatprep.subr.bf16.mxu0 0
    %1715 = vmatpush1.bf16.msra.mxu0 0
    %1716 = vmatprep.subr.bf16.mxu0 0
    %1717 = vmatpush1.bf16.msra.mxu0 0
    %1718 = vmatprep.subr.bf16.mxu0 0
    %1719 = vmatpush1.bf16.msra.mxu0 %v1700
    %1720 = vmatprep.subr.bf16.mxu0 0
    %1721 = vmatpush1.bf16.msra.mxu0 %v1699
    %1722 = vmatprep.subr.bf16.mxu0 0
    %1723 = vmatpush2.bf16.msra.mxu0 0
    %1724 = vmatprep.subr.bf16.mxu0 0
    %1725 = vmatpush2.bf16.msra.mxu0 0
    %1726 = vmatprep.subr.bf16.mxu0 0
    %1727 = vmatpush2.bf16.msra.mxu0 0
    %1728 = vmatprep.subr.bf16.mxu0 0
    %1729 = vmatpush2.bf16.msra.mxu0 0
    %1730 = vmatprep.subr.bf16.mxu0 0
    %1731 = vmatpush2.bf16.msra.mxu0 0
    %1732 = vmatprep.subr.bf16.mxu0 0
    %1733 = vmatpush2.bf16.msra.mxu0 0
    %1734 = vmatprep.subr.bf16.mxu0 0
    %1735 = vmatpush2.bf16.msra.mxu0 0
    %1736 = vmatprep.subr.bf16.mxu0 0
    %1737 = vmatpush2.bf16.msra.mxu0 0
    %1738 = vmatprep.mubr.bf16.mxu0 0
    %1739 = vmatmul.mubr.bf16.gmra.mxu0 %v1704
    %v1740 = vpop.f32.mrf.mxu0
    %v1741 = vadd.f32 %v1685, %v1740
    %v1742 = vpop.f32.mrf.mxu0
    %v1743 = vpop.f32.mrf.mxu0
    %v1744 = vpop.f32.mrf.mxu0
    %1745 = vdwg.mxu0
    %vm1746 = vcmask 17408
    %1747 = vst.msk [vmem:[#allocation10] sm:$0x3] %vm1746, %v1741
    // Predicated region
    $region50: #{lstm_model_forward.1} parent=1 // pred_check
      _
    $region51: #{lstm_model_forward.1} parent=1 // pred_check_branch
      %1749 = sbr.rel (0) target = $region53
    $region52: #{lstm_model_forward.1} parent=1 // pred_region
      %s1751 = ssub.s32 32, 32
      %1752 = vsyncadd [#allocation6], %s1751
      %s1754 = sshll.u32 [#allocation10], 4
      %s1755 = int_to_ptr.vmem [resolvable:$true] %s1754
      %1757 = dma.vmem_to_hbm [thread:$0]  %s1755, 32, %s9, [#allocation6]
    $region53: #{lstm_model_forward.1} parent=1 // pred_fallthru
      _
    // Predicated region
    $region54: #{lstm_model_forward.1} parent=1 // pred_check
      _
    $region55: #{lstm_model_forward.1} parent=1 // pred_check_branch
      %1759 = sbr.rel (0) target = $region57
    $region56: #{lstm_model_forward.1} parent=1 // pred_region
      %1760 = dma.done [#allocation6], 32
    $region57: #{lstm_model_forward.1} parent=1 // pred_fallthru
      _
    %1761 = vsyncpa [#allocation5], 1
    %1762 = vsyncpa [#allocation8], 1
    %1763 = vsyncpa [#allocation6], 1

</llo_original>
